<compile_context>
chip_gen: v5e
topology: v5e:2x2
jax: 0.10.0
libtpu: 0.0.40
codegen_flags: <defaults>
</compile_context>

<pallas_src>
import jax
import jax.numpy as jnp
from jax.experimental import pallas as pl
from jax.experimental.pallas import tpu as pltpu

INPUT_SIZE = 26
HIDDEN = 512
LSTM_H = HIDDEN // 2      # 256
PC_H = HIDDEN // 4        # 128
OUT = 3

F_PAD = 128               # lane-padded input feature dim
OUT_PAD = 128             # lane-padded fused output dim
NEG_BIG = -1e30           # softmax mask value for padded lanes


def _trading_bot_kernel(
    x_ref,                         # (tb, 128)  bf16  (features zero-padded)
    w1_ref, b1_ref,                # LSTM layer 0: (128, 3H) bf16, (1, 3H) f32
    w2_ref, b2_ref,                # LSTM layer 1: (256, 3H) bf16, (1, 3H) f32
    hw1_ref, hb1_ref,              # fused head Linear1: (256, 384) bf16, (1, 384) f32
    pcw2_ref, pcb2_ref,            # position_control Linear2 row: (1, 128) f32, (1, 1) f32
    ahw2_ref, ahb2_ref,            # action_head Linear2 (padded): (256, 128) bf16, (1, 128) f32
    out_ref,                       # (tb, 128) f32 fused output slab
):
    H = LSTM_H

    def lstm_step_from_zero(inp_bf16, w_ref, b_ref):
        # Packed gates [i | g | o]; forget gate omitted (multiplies c_prev == 0).
        gates = jnp.dot(inp_bf16, w_ref[...],
                        preferred_element_type=jnp.float32) + b_ref[...]
        i_g = jax.nn.sigmoid(gates[:, 0 * H:1 * H])
        g_g = jnp.tanh(gates[:, 1 * H:2 * H])
        o_g = jax.nn.sigmoid(gates[:, 2 * H:3 * H])
        return o_g * jnp.tanh(i_g * g_g)           # float32 (tb, 256)

    h1 = lstm_step_from_zero(x_ref[...], w1_ref, b1_ref)
    h2 = lstm_step_from_zero(h1.astype(jnp.bfloat16), w2_ref, b2_ref)
    h2b = h2.astype(jnp.bfloat16)

    # ---- fused first Linear of BOTH heads: (tb,256) @ (256,384) + bias, ReLU
    head = jnp.dot(h2b, hw1_ref[...],
                   preferred_element_type=jnp.float32) + hb1_ref[...]
    head = jnp.maximum(head, 0.0)
    p = head[:, :PC_H]                 # (tb, 128)  position_control branch
    a = head[:, PC_H:]                 # (tb, 256)  action_head branch

    # ---- position_control Linear2 (out dim 1): VPU multiply + lane reduce
    ps = jnp.sum(p * pcw2_ref[...], axis=-1, keepdims=True) + pcb2_ref[...]
    ps = jax.nn.sigmoid(jax.nn.sigmoid(ps))        # Sequential Sigmoid + extra sigmoid

    # ---- action_head Linear2, output lanes padded 3 -> 128 (zero weight cols)
    logits = jnp.dot(a.astype(jnp.bfloat16), ahw2_ref[...],
                     preferred_element_type=jnp.float32) + ahb2_ref[...]

    tb = logits.shape[0]
    lane = jax.lax.broadcasted_iota(jnp.int32, (tb, OUT_PAD), 1)
    neg = jnp.where(lane < OUT, 0.0, NEG_BIG).astype(jnp.float32)

    def masked_softmax(z):
        z = z + neg                                 # kill padded lanes exactly
        m = jnp.max(z, axis=-1, keepdims=True)
        e = jnp.exp(z - m)
        return e * pl.reciprocal(jnp.sum(e, axis=-1, keepdims=True), approx=True)

    # double softmax over the 3 real action lanes (padded lanes stay exactly 0)
    ap = masked_softmax(masked_softmax(logits))

    # ---- fuse outputs into one lane-dense slab: lanes 0:3 = ap, lane 3 = ps
    out_ref[...] = jnp.where(lane == OUT, ps, ap)


def smart_trading_bot_forward(x, params):
    """x: (B, input_size) float32. Returns (action_probs (B,3), position_size (B,1))."""
    if x.ndim == 1:
        x = x[None, :]
    B, F = x.shape

    # pad / truncate feature dim to INPUT_SIZE (mirrors torch forward), then
    # zero-pad to a full 128-lane block (exact: padded weight rows are zero).
    if F < INPUT_SIZE:
        x = jnp.concatenate([x, jnp.zeros((B, INPUT_SIZE - F), x.dtype)], axis=-1)
    elif F > INPUT_SIZE:
        x = x[:, :INPUT_SIZE]
    x = jnp.pad(x, ((0, 0), (0, F_PAD - INPUT_SIZE)))

    # batch tiling: pad to a multiple of 8 sublanes; 256-row tiles for large B
    if B <= 256:
        tile_b = ((B + 7) // 8) * 8
    else:
        tile_b = 256
    b_pad = ((B + tile_b - 1) // tile_b) * tile_b
    if b_pad != B:
        x = jnp.pad(x, ((0, b_pad - B), (0, 0)))
    x = x.astype(jnp.bfloat16)
    grid = (b_pad // tile_b,)

    weights = (
        params["w1"], params["b1"],
        params["w2"], params["b2"],
        params["hw1"], params["hb1"],
        params["pcw2"], params["pcb2"],
        params["ahw2"], params["ahb2"],
    )

    x_spec = pl.BlockSpec((tile_b, F_PAD), lambda i: (i, 0))
    w_specs = [pl.BlockSpec(w.shape, lambda i: (0, 0)) for w in weights]
    out_spec = pl.BlockSpec((tile_b, OUT_PAD), lambda i: (i, 0))

    out = pl.pallas_call(
        _trading_bot_kernel,
        out_shape=jax.ShapeDtypeStruct((b_pad, OUT_PAD), jnp.float32),
        grid=grid,
        in_specs=[x_spec] + w_specs,
        out_specs=out_spec,
        compiler_params=pltpu.CompilerParams(
            dimension_semantics=("parallel",),
            vmem_limit_bytes=16 << 20,
        ),
    )(x, *weights)

    action_probs = out[:B, :OUT]
    position_size = out[:B, OUT:OUT + 1]
    return action_probs, position_size


def _pack_lstm_layer(w_ih, b_ih, b_hh, in_pad):
    """PyTorch LSTM gate order is [i, f, g, o]; keep only i, g, o (f is dead)."""
    H = LSTM_H
    rows = jnp.concatenate(
        [w_ih[0 * H:1 * H], w_ih[2 * H:3 * H], w_ih[3 * H:4 * H]], axis=0)  # (3H, in)
    w = rows.T                                                               # (in, 3H)
    if in_pad > w.shape[0]:
        w = jnp.pad(w, ((0, in_pad - w.shape[0]), (0, 0)))
    b = b_ih + b_hh
    b = jnp.concatenate([b[0 * H:1 * H], b[2 * H:3 * H], b[3 * H:4 * H]])[None, :]
    return w.astype(jnp.bfloat16), b.astype(jnp.float32)


def pack_params(tp):
    """Pack PyTorch-layout parameters into the kernel's lane-dense bf16 layout."""
    w1, b1 = _pack_lstm_layer(tp["w_ih_l0"], tp["b_ih_l0"], tp["b_hh_l0"], F_PAD)
    w2, b2 = _pack_lstm_layer(tp["w_ih_l1"], tp["b_ih_l1"], tp["b_hh_l1"], LSTM_H)

    # fused first Linear of both heads: [pc_w1.T | ah_w1.T] -> (256, 384)
    hw1 = jnp.concatenate([tp["pc_w1"].T, tp["ah_w1"].T], axis=1).astype(jnp.bfloat16)
    hb1 = jnp.concatenate([tp["pc_b1"], tp["ah_b1"]])[None, :].astype(jnp.float32)

    # position_control second Linear as a row vector (VPU reduce in-kernel)
    pcw2 = tp["pc_w2"].astype(jnp.float32)                 # (1, 128)
    pcb2 = tp["pc_b2"][None, :].astype(jnp.float32)        # (1, 1)

    # action_head second Linear, output lanes zero-padded 3 -> 128
    ahw2 = jnp.zeros((LSTM_H, OUT_PAD), jnp.float32).at[:, :OUT].set(tp["ah_w2"].T)
    ahb2 = jnp.zeros((1, OUT_PAD), jnp.float32).at[0, :OUT].set(tp["ah_b2"])

    return {
        "w1": w1, "b1": b1,
        "w2": w2, "b2": b2,
        "hw1": hw1, "hb1": hb1,
        "pcw2": pcw2, "pcb2": pcb2,
        "ahw2": ahw2.astype(jnp.bfloat16), "ahb2": ahb2.astype(jnp.float32),
    }


def init_params(key):
    """Deterministic synthetic parameters with the exact PyTorch shapes, then packed."""
    H, F = LSTM_H, INPUT_SIZE
    ks = jax.random.split(key, 16)
    s = 0.05

    def nrm(k, shape):
        return s * jax.random.normal(k, shape, dtype=jnp.float32)

    torch_params = {
        # LSTM layer 0 (W_ih_l0 (4H, F), b_ih/b_hh (4H,)); W_hh multiplies zero state.
        "w_ih_l0": nrm(ks[0], (4 * H, F)),
        "b_ih_l0": nrm(ks[1], (4 * H,)),
        "b_hh_l0": nrm(ks[2], (4 * H,)),
        # LSTM layer 1 (W_ih_l1 (4H, H))
        "w_ih_l1": nrm(ks[3], (4 * H, H)),
        "b_ih_l1": nrm(ks[4], (4 * H,)),
        "b_hh_l1": nrm(ks[5], (4 * H,)),
        # position_control: Linear(H, H/4), Linear(H/4, 1)
        "pc_w1": nrm(ks[6], (PC_H, H)), "pc_b1": nrm(ks[7], (PC_H,)),
        "pc_w2": nrm(ks[8], (1, PC_H)), "pc_b2": nrm(ks[9], (1,)),
        # action_head: Linear(H, H), Linear(H, 3)
        "ah_w1": nrm(ks[10], (H, H)), "ah_b1": nrm(ks[11], (H,)),
        "ah_w2": nrm(ks[12], (OUT, H)), "ah_b2": nrm(ks[13], (OUT,)),
    }
    return pack_params(torch_params)


if __name__ == "__main__":
    key = jax.random.PRNGKey(0)
    kp, kx = jax.random.split(key)
    params = init_params(kp)

    B = 2
    x = jax.random.normal(kx, (B, INPUT_SIZE), dtype=jnp.float32)

    action_probs, position_size = smart_trading_bot_forward(x, params)
    jax.block_until_ready((action_probs, position_size))

    assert action_probs.shape == (B, OUT)
    assert position_size.shape == (B, 1)
    # double-softmax output still sums to ~1 over actions (approx reciprocal + bf16 matmuls)
    assert bool(jnp.all(jnp.abs(jnp.sum(action_probs, axis=-1) - 1.0) < 5e-3))
    assert bool(jnp.all((position_size > 0.0) & (position_size < 1.0)))
    print("KERNEL_OK")
</pallas_src>

<mosaic_0001>
module attributes {stable_mosaic.version = 11 : i64} {
  func.func @_trading_bot_kernel(%arg0: i32, %arg1: memref<8x128xbf16, #tpu.memory_space<vmem>>, %arg2: memref<128x768xbf16, #tpu.memory_space<vmem>>, %arg3: memref<1x768xf32, #tpu.memory_space<vmem>>, %arg4: memref<256x768xbf16, #tpu.memory_space<vmem>>, %arg5: memref<1x768xf32, #tpu.memory_space<vmem>>, %arg6: memref<256x384xbf16, #tpu.memory_space<vmem>>, %arg7: memref<1x384xf32, #tpu.memory_space<vmem>>, %arg8: memref<1x128xf32, #tpu.memory_space<vmem>>, %arg9: memref<1x1xf32, #tpu.memory_space<vmem>>, %arg10: memref<256x128xbf16, #tpu.memory_space<vmem>>, %arg11: memref<1x128xf32, #tpu.memory_space<vmem>>, %arg12: memref<8x128xf32, #tpu.memory_space<vmem>>) attributes {dimension_semantics = [#tpu.dimension_semantics<parallel>], iteration_bounds = array<i64: 1>, scalar_prefetch = 0 : i64, scratch_operands = 0 : i64, tpu.core_type = #tpu.core_type<tc>, window_params = [{transform_indices = @transform_0, window_bounds = array<i64: 8, 128>}, {pipeline_mode = #tpu.pipeline_mode<synchronous>, transform_indices = @transform_1, window_bounds = array<i64: 128, 768>}, {pipeline_mode = #tpu.pipeline_mode<synchronous>, transform_indices = @transform_2, window_bounds = array<i64: 1, 768>}, {pipeline_mode = #tpu.pipeline_mode<synchronous>, transform_indices = @transform_3, window_bounds = array<i64: 256, 768>}, {pipeline_mode = #tpu.pipeline_mode<synchronous>, transform_indices = @transform_4, window_bounds = array<i64: 1, 768>}, {pipeline_mode = #tpu.pipeline_mode<synchronous>, transform_indices = @transform_5, window_bounds = array<i64: 256, 384>}, {pipeline_mode = #tpu.pipeline_mode<synchronous>, transform_indices = @transform_6, window_bounds = array<i64: 1, 384>}, {pipeline_mode = #tpu.pipeline_mode<synchronous>, transform_indices = @transform_7, window_bounds = array<i64: 1, 128>}, {pipeline_mode = #tpu.pipeline_mode<synchronous>, transform_indices = @transform_8, window_bounds = array<i64: 1, 1>}, {pipeline_mode = #tpu.pipeline_mode<synchronous>, transform_indices = @transform_9, window_bounds = array<i64: 256, 128>}, {pipeline_mode = #tpu.pipeline_mode<synchronous>, transform_indices = @transform_10, window_bounds = array<i64: 1, 128>}, {transform_indices = @transform_11, window_bounds = array<i64: 8, 128>}]} {
    %c0 = arith.constant 0 : index
    %c0_0 = arith.constant 0 : index
    %0 = vector.load %arg1[%c0, %c0_0] : memref<8x128xbf16, #tpu.memory_space<vmem>>, vector<8x128xbf16>
    %c0_1 = arith.constant 0 : index
    %c0_2 = arith.constant 0 : index
    %1 = vector.load %arg2[%c0_1, %c0_2] : memref<128x768xbf16, #tpu.memory_space<vmem>>, vector<128x768xbf16>
    %cst = arith.constant dense<0.000000e+00> : vector<8x768xf32>
    %2 = tpu.matmul %0, %1, %cst {dimension_numbers = #tpu.dot_dimension_numbers<[1], [0], [0], [1], [0, 0, 1, 1], [], []>} : vector<8x128xbf16>, vector<128x768xbf16>, vector<8x768xf32> -> vector<8x768xf32>
    %c0_3 = arith.constant 0 : index
    %c0_4 = arith.constant 0 : index
    %3 = vector.load %arg3[%c0_3, %c0_4] : memref<1x768xf32, #tpu.memory_space<vmem>>, vector<1x768xf32>
    %4 = vector.broadcast %3 : vector<1x768xf32> to vector<8x768xf32>
    %5 = arith.addf %2, %4 : vector<8x768xf32>
    %6 = vector.extract_strided_slice %5 {offsets = [0, 0], sizes = [8, 256], strides = [1, 1]} : vector<8x768xf32> to vector<8x256xf32>
    %7 = arith.negf %6 : vector<8x256xf32>
    %8 = math.exp %7 : vector<8x256xf32>
    %cst_5 = arith.constant 1.000000e+00 : f32
    %9 = vector.broadcast %cst_5 : f32 to vector<8x256xf32>
    %10 = arith.addf %9, %8 : vector<8x256xf32>
    %11 = arith.divf %9, %10 : vector<8x256xf32>
    %12 = vector.extract_strided_slice %5 {offsets = [0, 256], sizes = [8, 256], strides = [1, 1]} : vector<8x768xf32> to vector<8x256xf32>
    %13 = math.tanh %12 : vector<8x256xf32>
    %14 = vector.extract_strided_slice %5 {offsets = [0, 512], sizes = [8, 256], strides = [1, 1]} : vector<8x768xf32> to vector<8x256xf32>
    %15 = arith.negf %14 : vector<8x256xf32>
    %16 = math.exp %15 : vector<8x256xf32>
    %cst_6 = arith.constant 1.000000e+00 : f32
    %17 = vector.broadcast %cst_6 : f32 to vector<8x256xf32>
    %18 = arith.addf %17, %16 : vector<8x256xf32>
    %19 = arith.divf %17, %18 : vector<8x256xf32>
    %20 = arith.mulf %11, %13 : vector<8x256xf32>
    %21 = math.tanh %20 : vector<8x256xf32>
    %22 = arith.mulf %19, %21 : vector<8x256xf32>
    %23 = arith.truncf %22 : vector<8x256xf32> to vector<8x256xbf16>
    %c0_7 = arith.constant 0 : index
    %c0_8 = arith.constant 0 : index
    %24 = vector.load %arg4[%c0_7, %c0_8] : memref<256x768xbf16, #tpu.memory_space<vmem>>, vector<256x768xbf16>
    %cst_9 = arith.constant dense<0.000000e+00> : vector<8x768xf32>
    %25 = tpu.matmul %23, %24, %cst_9 {dimension_numbers = #tpu.dot_dimension_numbers<[1], [0], [0], [1], [0, 0, 1, 1], [], []>} : vector<8x256xbf16>, vector<256x768xbf16>, vector<8x768xf32> -> vector<8x768xf32>
    %c0_10 = arith.constant 0 : index
    %c0_11 = arith.constant 0 : index
    %26 = vector.load %arg5[%c0_10, %c0_11] : memref<1x768xf32, #tpu.memory_space<vmem>>, vector<1x768xf32>
    %27 = vector.broadcast %26 : vector<1x768xf32> to vector<8x768xf32>
    %28 = arith.addf %25, %27 : vector<8x768xf32>
    %29 = vector.extract_strided_slice %28 {offsets = [0, 0], sizes = [8, 256], strides = [1, 1]} : vector<8x768xf32> to vector<8x256xf32>
    %30 = arith.negf %29 : vector<8x256xf32>
    %31 = math.exp %30 : vector<8x256xf32>
    %cst_12 = arith.constant 1.000000e+00 : f32
    %32 = vector.broadcast %cst_12 : f32 to vector<8x256xf32>
    %33 = arith.addf %32, %31 : vector<8x256xf32>
    %34 = arith.divf %32, %33 : vector<8x256xf32>
    %35 = vector.extract_strided_slice %28 {offsets = [0, 256], sizes = [8, 256], strides = [1, 1]} : vector<8x768xf32> to vector<8x256xf32>
    %36 = math.tanh %35 : vector<8x256xf32>
    %37 = vector.extract_strided_slice %28 {offsets = [0, 512], sizes = [8, 256], strides = [1, 1]} : vector<8x768xf32> to vector<8x256xf32>
    %38 = arith.negf %37 : vector<8x256xf32>
    %39 = math.exp %38 : vector<8x256xf32>
    %cst_13 = arith.constant 1.000000e+00 : f32
    %40 = vector.broadcast %cst_13 : f32 to vector<8x256xf32>
    %41 = arith.addf %40, %39 : vector<8x256xf32>
    %42 = arith.divf %40, %41 : vector<8x256xf32>
    %43 = arith.mulf %34, %36 : vector<8x256xf32>
    %44 = math.tanh %43 : vector<8x256xf32>
    %45 = arith.mulf %42, %44 : vector<8x256xf32>
    %46 = arith.truncf %45 : vector<8x256xf32> to vector<8x256xbf16>
    %c0_14 = arith.constant 0 : index
    %c0_15 = arith.constant 0 : index
    %47 = vector.load %arg6[%c0_14, %c0_15] : memref<256x384xbf16, #tpu.memory_space<vmem>>, vector<256x384xbf16>
    %cst_16 = arith.constant dense<0.000000e+00> : vector<8x384xf32>
    %48 = tpu.matmul %46, %47, %cst_16 {dimension_numbers = #tpu.dot_dimension_numbers<[1], [0], [0], [1], [0, 0, 1, 1], [], []>} : vector<8x256xbf16>, vector<256x384xbf16>, vector<8x384xf32> -> vector<8x384xf32>
    %c0_17 = arith.constant 0 : index
    %c0_18 = arith.constant 0 : index
    %49 = vector.load %arg7[%c0_17, %c0_18] : memref<1x384xf32, #tpu.memory_space<vmem>>, vector<1x384xf32>
    %50 = vector.broadcast %49 : vector<1x384xf32> to vector<8x384xf32>
    %51 = arith.addf %48, %50 : vector<8x384xf32>
    %cst_19 = arith.constant 0.000000e+00 : f32
    %52 = vector.broadcast %cst_19 : f32 to vector<8x384xf32>
    %53 = arith.maximumf %51, %52 : vector<8x384xf32>
    %54 = vector.extract_strided_slice %53 {offsets = [0, 0], sizes = [8, 128], strides = [1, 1]} : vector<8x384xf32> to vector<8x128xf32>
    %55 = vector.extract_strided_slice %53 {offsets = [0, 128], sizes = [8, 256], strides = [1, 1]} : vector<8x384xf32> to vector<8x256xf32>
    %c0_20 = arith.constant 0 : index
    %c0_21 = arith.constant 0 : index
    %56 = vector.load %arg8[%c0_20, %c0_21] : memref<1x128xf32, #tpu.memory_space<vmem>>, vector<1x128xf32>
    %57 = vector.broadcast %56 : vector<1x128xf32> to vector<8x128xf32>
    %58 = arith.mulf %54, %57 : vector<8x128xf32>
    %cst_22 = arith.constant dense<0.000000e+00> : vector<8xf32>
    %59 = vector.multi_reduction <add>, %58, %cst_22 [1] : vector<8x128xf32> to vector<8xf32>
    %60 = vector.shape_cast %59 : vector<8xf32> to vector<8x1xf32>
    %c0_23 = arith.constant 0 : index
    %c0_24 = arith.constant 0 : index
    %61 = vector.load %arg9[%c0_23, %c0_24] : memref<1x1xf32, #tpu.memory_space<vmem>>, vector<1x1xf32>
    %62 = vector.broadcast %61 : vector<1x1xf32> to vector<8x1xf32>
    %63 = arith.addf %60, %62 : vector<8x1xf32>
    %64 = arith.negf %63 : vector<8x1xf32>
    %65 = math.exp %64 : vector<8x1xf32>
    %cst_25 = arith.constant 1.000000e+00 : f32
    %66 = vector.broadcast %cst_25 : f32 to vector<8x1xf32>
    %67 = arith.addf %66, %65 : vector<8x1xf32>
    %68 = arith.divf %66, %67 : vector<8x1xf32>
    %69 = arith.negf %68 : vector<8x1xf32>
    %70 = math.exp %69 : vector<8x1xf32>
    %cst_26 = arith.constant 1.000000e+00 : f32
    %71 = vector.broadcast %cst_26 : f32 to vector<8x1xf32>
    %72 = arith.addf %71, %70 : vector<8x1xf32>
    %73 = arith.divf %71, %72 : vector<8x1xf32>
    %74 = arith.truncf %55 : vector<8x256xf32> to vector<8x256xbf16>
    %c0_27 = arith.constant 0 : index
    %c0_28 = arith.constant 0 : index
    %75 = vector.load %arg10[%c0_27, %c0_28] : memref<256x128xbf16, #tpu.memory_space<vmem>>, vector<256x128xbf16>
    %cst_29 = arith.constant dense<0.000000e+00> : vector<8x128xf32>
    %76 = tpu.matmul %74, %75, %cst_29 {dimension_numbers = #tpu.dot_dimension_numbers<[1], [0], [0], [1], [0, 0, 1, 1], [], []>} : vector<8x256xbf16>, vector<256x128xbf16>, vector<8x128xf32> -> vector<8x128xf32>
    %c0_30 = arith.constant 0 : index
    %c0_31 = arith.constant 0 : index
    %77 = vector.load %arg11[%c0_30, %c0_31] : memref<1x128xf32, #tpu.memory_space<vmem>>, vector<1x128xf32>
    %78 = vector.broadcast %77 : vector<1x128xf32> to vector<8x128xf32>
    %79 = arith.addf %76, %78 : vector<8x128xf32>
    %80 = tpu.iota {dimensions = array<i32: 1>} : vector<8x128xi32>
    %c3_i32 = arith.constant 3 : i32
    %81 = vector.broadcast %c3_i32 : i32 to vector<8x128xi32>
    %82 = arith.cmpi slt, %80, %81 : vector<8x128xi32>
    %cst_32 = arith.constant 0.000000e+00 : f32
    %cst_33 = arith.constant -1.000000e+30 : f32
    %83 = vector.broadcast %cst_32 : f32 to vector<8x128xf32>
    %84 = vector.broadcast %cst_33 : f32 to vector<8x128xf32>
    %85 = arith.select %82, %83, %84 : vector<8x128xi1>, vector<8x128xf32>
    %86 = arith.addf %79, %85 : vector<8x128xf32>
    %cst_34 = arith.constant dense<0xFF800000> : vector<8xf32>
    %87 = vector.multi_reduction <maximumf>, %86, %cst_34 [1] : vector<8x128xf32> to vector<8xf32>
    %88 = vector.shape_cast %87 : vector<8xf32> to vector<8x1xf32>
    %89 = vector.broadcast %88 : vector<8x1xf32> to vector<8x128xf32>
    %90 = arith.subf %86, %89 : vector<8x128xf32>
    %91 = math.exp %90 : vector<8x128xf32>
    %cst_35 = arith.constant dense<0.000000e+00> : vector<8xf32>
    %92 = vector.multi_reduction <add>, %91, %cst_35 [1] : vector<8x128xf32> to vector<8xf32>
    %93 = vector.shape_cast %92 : vector<8xf32> to vector<8x1xf32>
    %94 = tpu.reciprocal %93 {approx = true} : vector<8x1xf32> -> vector<8x1xf32>
    %95 = vector.broadcast %94 : vector<8x1xf32> to vector<8x128xf32>
    %96 = arith.mulf %91, %95 : vector<8x128xf32>
    %97 = arith.addf %96, %85 : vector<8x128xf32>
    %cst_36 = arith.constant dense<0xFF800000> : vector<8xf32>
    %98 = vector.multi_reduction <maximumf>, %97, %cst_36 [1] : vector<8x128xf32> to vector<8xf32>
    %99 = vector.shape_cast %98 : vector<8xf32> to vector<8x1xf32>
    %100 = vector.broadcast %99 : vector<8x1xf32> to vector<8x128xf32>
    %101 = arith.subf %97, %100 : vector<8x128xf32>
    %102 = math.exp %101 : vector<8x128xf32>
    %cst_37 = arith.constant dense<0.000000e+00> : vector<8xf32>
    %103 = vector.multi_reduction <add>, %102, %cst_37 [1] : vector<8x128xf32> to vector<8xf32>
    %104 = vector.shape_cast %103 : vector<8xf32> to vector<8x1xf32>
    %105 = tpu.reciprocal %104 {approx = true} : vector<8x1xf32> -> vector<8x1xf32>
    %106 = vector.broadcast %105 : vector<8x1xf32> to vector<8x128xf32>
    %107 = arith.mulf %102, %106 : vector<8x128xf32>
    %c3_i32_38 = arith.constant 3 : i32
    %108 = vector.broadcast %c3_i32_38 : i32 to vector<8x128xi32>
    %109 = arith.cmpi eq, %80, %108 : vector<8x128xi32>
    %110 = vector.shape_cast %73 : vector<8x1xf32> to vector<8x1xf32>
    %111 = vector.broadcast %110 : vector<8x1xf32> to vector<8x128xf32>
    %112 = arith.select %109, %111, %107 : vector<8x128xi1>, vector<8x128xf32>
    %c0_39 = arith.constant 0 : index
    %c0_40 = arith.constant 0 : index
    %113 = vector.load %arg12[%c0_39, %c0_40] : memref<8x128xf32, #tpu.memory_space<vmem>>, vector<8x128xf32>
    tpu.vector_store %arg12[%c0_39, %c0_40], %112 {strides = array<i32>} : memref<8x128xf32, #tpu.memory_space<vmem>>, vector<8x128xf32>,
    return
  }
  func.func @transform_0(%arg0: i32) -> (i32, i32) {
    %c0_i32 = arith.constant 0 : i32
    %c0_i32_0 = arith.constant 0 : i32
    return %arg0, %c0_i32 : i32, i32
  }
  func.func @transform_1(%arg0: i32) -> (i32, i32) {
    %c0_i32 = arith.constant 0 : i32
    %c0_i32_0 = arith.constant 0 : i32
    %c0_i32_1 = arith.constant 0 : i32
    return %c0_i32, %c0_i32_0 : i32, i32
  }
  func.func @transform_2(%arg0: i32) -> (i32, i32) {
    %c0_i32 = arith.constant 0 : i32
    %c0_i32_0 = arith.constant 0 : i32
    %c0_i32_1 = arith.constant 0 : i32
    return %c0_i32, %c0_i32_0 : i32, i32
  }
  func.func @transform_3(%arg0: i32) -> (i32, i32) {
    %c0_i32 = arith.constant 0 : i32
    %c0_i32_0 = arith.constant 0 : i32
    %c0_i32_1 = arith.constant 0 : i32
    return %c0_i32, %c0_i32_0 : i32, i32
  }
  func.func @transform_4(%arg0: i32) -> (i32, i32) {
    %c0_i32 = arith.constant 0 : i32
    %c0_i32_0 = arith.constant 0 : i32
    %c0_i32_1 = arith.constant 0 : i32
    return %c0_i32, %c0_i32_0 : i32, i32
  }
  func.func @transform_5(%arg0: i32) -> (i32, i32) {
    %c0_i32 = arith.constant 0 : i32
    %c0_i32_0 = arith.constant 0 : i32
    %c0_i32_1 = arith.constant 0 : i32
    return %c0_i32, %c0_i32_0 : i32, i32
  }
  func.func @transform_6(%arg0: i32) -> (i32, i32) {
    %c0_i32 = arith.constant 0 : i32
    %c0_i32_0 = arith.constant 0 : i32
    %c0_i32_1 = arith.constant 0 : i32
    return %c0_i32, %c0_i32_0 : i32, i32
  }
  func.func @transform_7(%arg0: i32) -> (i32, i32) {
    %c0_i32 = arith.constant 0 : i32
    %c0_i32_0 = arith.constant 0 : i32
    %c0_i32_1 = arith.constant 0 : i32
    return %c0_i32, %c0_i32_0 : i32, i32
  }
  func.func @transform_8(%arg0: i32) -> (i32, i32) {
    %c0_i32 = arith.constant 0 : i32
    %c0_i32_0 = arith.constant 0 : i32
    %c0_i32_1 = arith.constant 0 : i32
    return %c0_i32, %c0_i32_0 : i32, i32
  }
  func.func @transform_9(%arg0: i32) -> (i32, i32) {
    %c0_i32 = arith.constant 0 : i32
    %c0_i32_0 = arith.constant 0 : i32
    %c0_i32_1 = arith.constant 0 : i32
    return %c0_i32, %c0_i32_0 : i32, i32
  }
  func.func @transform_10(%arg0: i32) -> (i32, i32) {
    %c0_i32 = arith.constant 0 : i32
    %c0_i32_0 = arith.constant 0 : i32
    %c0_i32_1 = arith.constant 0 : i32
    return %c0_i32, %c0_i32_0 : i32, i32
  }
  func.func @transform_11(%arg0: i32) -> (i32, i32) {
    %c0_i32 = arith.constant 0 : i32
    %c0_i32_0 = arith.constant 0 : i32
    return %arg0, %c0_i32 : i32, i32
  }
}

</mosaic_0001>

<llo_original>
// kernel: tpu_custom_call.1
$region0: #{tpu_custom_call.1}
  #allocation0 [shape = 'u32[]', space=smem, size = 0x4, offset = 0x4, fixed_abs, tag = 'smem constant byte address 0x4 - core index']
  #allocation1 [shape = 'u32[72,128]{1,0:T(1,128)}', space=vmem, size = 0x9000, scoped, tag = 'internal scratch']
  #allocation2 [shape = 'f32[1,1]{1,0:T(1,128)S(1)}', space=vmem, size = 0x200, scoped, tag = 'scoped memory for tpu_custom_call.1']
  %s0 = inlined_call_operand.hbm [shape: bf16[8,128], index: 0, kind: input, shape index: {}]
  %s1 = inlined_call_operand.hbm [shape: bf16[128,768], index: 1, kind: input, shape index: {}]
  %s2 = inlined_call_operand.hbm [shape: f32[1,768], index: 2, kind: input, shape index: {}]
  %s3 = inlined_call_operand.hbm [shape: bf16[256,768], index: 3, kind: input, shape index: {}]
  %s4 = inlined_call_operand.hbm [shape: f32[1,768], index: 4, kind: input, shape index: {}]
  %s5 = inlined_call_operand.hbm [shape: bf16[256,384], index: 5, kind: input, shape index: {}]
  %s6 = inlined_call_operand.vmem [shape: f32[1,384], index: 6, kind: input, shape index: {}]
  %s7 = inlined_call_operand.vmem [shape: f32[1,128], index: 7, kind: input, shape index: {}]
  %s8 = inlined_call_operand.<no memory space> [shape: f32[1,1], index: 8, kind: input, shape index: {}]
  %s9 = inlined_call_operand.hbm [shape: bf16[256,128], index: 9, kind: input, shape index: {}]
  %s10 = inlined_call_operand.vmem [shape: f32[1,128], index: 10, kind: input, shape index: {}]
  %s11 = inlined_call_operand.hbm [shape: f32[8,128], index: 11, kind: output, shape index: {}]
  %s12 = sld [smem:[#allocation0]]
  $region82: #{tpu_custom_call.1} parent=0
    _
  %s14 = ssub.s32 1, %s12
  %s15 = scalar_select 0, %s14, %s12
  %v16 = vstv %s8
  %17 = vst [vmem:[#allocation2] sm:$0x1] %v16
  $region1: #{tpu_custom_call.1} parent=0
    #allocation3 [shape = 'u8[2048]{0}', space=vmem, size = 0x800, scoped, tag = 'input window, operand 0, single buffered']
    #allocation4 [shape = 's32[1]{0}', space=sflag, size = 0x4, scoped, tag = 'scoped memory for tpu_custom_call.1']
    #allocation5 [shape = 's32[1]{0}', space=sflag, size = 0x4, scoped, tag = 'scoped memory for tpu_custom_call.1']
    #allocation6 [shape = 'u8[196608]{0}', space=vmem, size = 0x30000, scoped, tag = 'input window, operand 1, single buffered']
    #allocation7 [shape = 's32[1]{0}', space=sflag, size = 0x4, scoped, tag = 'scoped memory for tpu_custom_call.1']
    #allocation8 [shape = 'u8[3072]{0}', space=vmem, size = 0xc00, scoped, tag = 'input window, operand 2, single buffered']
    #allocation9 [shape = 'u8[393216]{0}', space=vmem, size = 0x60000, scoped, tag = 'input window, operand 3, single buffered']
    #allocation10 [shape = 's32[1]{0}', space=sflag, size = 0x4, scoped, tag = 'scoped memory for tpu_custom_call.1']
    #allocation11 [shape = 'u8[3072]{0}', space=vmem, size = 0xc00, scoped, tag = 'input window, operand 4, single buffered']
    #allocation12 [shape = 'u8[196608]{0}', space=vmem, size = 0x30000, scoped, tag = 'input window, operand 5, single buffered']
    #allocation13 [shape = 's32[1]{0}', space=sflag, size = 0x4, scoped, tag = 'scoped memory for tpu_custom_call.1']
    #allocation14 [shape = 'u8[65536]{0}', space=vmem, size = 0x10000, scoped, tag = 'input window, operand 9, single buffered']
    #allocation15 [shape = 'u8[4096]{0}', space=vmem, size = 0x1000, scoped, tag = 'output window, operand 0, single buffered']
    %18 = vsyncpa [#allocation4], 0
    %19 = vsyncpa [#allocation7], 0
    %20 = vsyncpa [#allocation10], 0
    %21 = vsyncpa [#allocation13], 0
    %22 = vsyncpa [#allocation5], 0
    // Predicated region
    $region2: #{tpu_custom_call.1} parent=1 // pred_check
      _
    $region3: #{tpu_custom_call.1} parent=1 // pred_check_branch
      %24 = sbr.rel (0) target = $region5
    $region4: #{tpu_custom_call.1} parent=1 // pred_region
      %26 = vsyncadd [#allocation4], 0
      %s28 = sshll.u32 %s0, 4
      %s29 = int_to_ptr.hbm [resolvable:$true] %s28
      %s30 = sshll.u32 [#allocation3], 4
      %s31 = int_to_ptr.vmem [resolvable:$true] %s30
      %33 = dma.hbm_to_vmem [thread:$0]  %s29, 64, %s31, [#allocation4]
    $region5: #{tpu_custom_call.1} parent=1 // pred_fallthru
      _
    // Predicated region
    $region6: #{tpu_custom_call.1} parent=1 // pred_check
      _
    $region7: #{tpu_custom_call.1} parent=1 // pred_check_branch
      %35 = sbr.rel (0) target = $region9
    $region8: #{tpu_custom_call.1} parent=1 // pred_region
      %37 = vsyncadd [#allocation7], 0
      %s38 = sshll.u32 %s1, 4
      %s39 = int_to_ptr.hbm [resolvable:$true] %s38
      %s40 = sshll.u32 [#allocation6], 4
      %s41 = int_to_ptr.vmem [resolvable:$true] %s40
      %46 = dma.hbm_to_vmem [thread:$0]  %s39, 6144, %s41, [#allocation7], 384, 384, 24
    $region9: #{tpu_custom_call.1} parent=1 // pred_fallthru
      _
    // Predicated region
    $region10: #{tpu_custom_call.1} parent=1 // pred_check
      _
    $region11: #{tpu_custom_call.1} parent=1 // pred_check_branch
      %48 = sbr.rel (0) target = $region13
    $region12: #{tpu_custom_call.1} parent=1 // pred_region
      %50 = vsyncadd [#allocation7], 0
      %s52 = sshll.u32 %s2, 4
      %s53 = int_to_ptr.hbm [resolvable:$true] %s52
      %s54 = sshll.u32 [#allocation8], 4
      %s55 = int_to_ptr.vmem [resolvable:$true] %s54
      %57 = dma.hbm_to_vmem [thread:$0]  %s53, 96, %s55, [#allocation7]
    $region13: #{tpu_custom_call.1} parent=1 // pred_fallthru
      _
    // Predicated region
    $region14: #{tpu_custom_call.1} parent=1 // pred_check
      _
    $region15: #{tpu_custom_call.1} parent=1 // pred_check_branch
      %59 = sbr.rel (0) target = $region17
    $region16: #{tpu_custom_call.1} parent=1 // pred_region
      %61 = vsyncadd [#allocation10], 0
      %s62 = sshll.u32 %s3, 4
      %s63 = int_to_ptr.hbm [resolvable:$true] %s62
      %s64 = sshll.u32 [#allocation9], 4
      %s65 = int_to_ptr.vmem [resolvable:$true] %s64
      %70 = dma.hbm_to_vmem [thread:$0]  %s63, 12288, %s65, [#allocation10], 384, 384, 24
    $region17: #{tpu_custom_call.1} parent=1 // pred_fallthru
      _
    // Predicated region
    $region18: #{tpu_custom_call.1} parent=1 // pred_check
      _
    $region19: #{tpu_custom_call.1} parent=1 // pred_check_branch
      %72 = sbr.rel (0) target = $region21
    $region20: #{tpu_custom_call.1} parent=1 // pred_region
      %74 = vsyncadd [#allocation10], 0
      %s76 = sshll.u32 %s4, 4
      %s77 = int_to_ptr.hbm [resolvable:$true] %s76
      %s78 = sshll.u32 [#allocation11], 4
      %s79 = int_to_ptr.vmem [resolvable:$true] %s78
      %81 = dma.hbm_to_vmem [thread:$0]  %s77, 96, %s79, [#allocation10]
    $region21: #{tpu_custom_call.1} parent=1 // pred_fallthru
      _
    // Predicated region
    $region22: #{tpu_custom_call.1} parent=1 // pred_check
      _
    $region23: #{tpu_custom_call.1} parent=1 // pred_check_branch
      %83 = sbr.rel (0) target = $region25
    $region24: #{tpu_custom_call.1} parent=1 // pred_region
      %85 = vsyncadd [#allocation13], 0
      %s86 = sshll.u32 %s5, 4
      %s87 = int_to_ptr.hbm [resolvable:$true] %s86
      %s88 = sshll.u32 [#allocation12], 4
      %s89 = int_to_ptr.vmem [resolvable:$true] %s88
      %94 = dma.hbm_to_vmem [thread:$0]  %s87, 6144, %s89, [#allocation13], 192, 192, 12
    $region25: #{tpu_custom_call.1} parent=1 // pred_fallthru
      _
    // Predicated region
    $region26: #{tpu_custom_call.1} parent=1 // pred_check
      _
    $region27: #{tpu_custom_call.1} parent=1 // pred_check_branch
      %96 = sbr.rel (0) target = $region29
    $region28: #{tpu_custom_call.1} parent=1 // pred_region
      _
    $region29: #{tpu_custom_call.1} parent=1 // pred_fallthru
      _
    // Predicated region
    $region30: #{tpu_custom_call.1} parent=1 // pred_check
      _
    $region31: #{tpu_custom_call.1} parent=1 // pred_check_branch
      %98 = sbr.rel (0) target = $region33
    $region32: #{tpu_custom_call.1} parent=1 // pred_region
      _
    $region33: #{tpu_custom_call.1} parent=1 // pred_fallthru
      _
    // Predicated region
    $region34: #{tpu_custom_call.1} parent=1 // pred_check
      _
    $region35: #{tpu_custom_call.1} parent=1 // pred_check_branch
      %100 = sbr.rel (0) target = $region37
    $region36: #{tpu_custom_call.1} parent=1 // pred_region
      _
    $region37: #{tpu_custom_call.1} parent=1 // pred_fallthru
      _
    // Predicated region
    $region38: #{tpu_custom_call.1} parent=1 // pred_check
      _
    $region39: #{tpu_custom_call.1} parent=1 // pred_check_branch
      %102 = sbr.rel (0) target = $region41
    $region40: #{tpu_custom_call.1} parent=1 // pred_region
      %104 = vsyncadd [#allocation13], 0
      %s105 = sshll.u32 %s9, 4
      %s106 = int_to_ptr.hbm [resolvable:$true] %s105
      %s107 = sshll.u32 [#allocation14], 4
      %s108 = int_to_ptr.vmem [resolvable:$true] %s107
      %113 = dma.hbm_to_vmem [thread:$0]  %s106, 2048, %s108, [#allocation13], 64, 64, 4
    $region41: #{tpu_custom_call.1} parent=1 // pred_fallthru
      _
    // Predicated region
    $region42: #{tpu_custom_call.1} parent=1 // pred_check
      _
    $region43: #{tpu_custom_call.1} parent=1 // pred_check_branch
      %115 = sbr.rel (0) target = $region45
    $region44: #{tpu_custom_call.1} parent=1 // pred_region
      _
    $region45: #{tpu_custom_call.1} parent=1 // pred_fallthru
      _
    // Predicated region
    $region46: #{tpu_custom_call.1} parent=1 // pred_check
      _
    $region47: #{tpu_custom_call.1} parent=1 // pred_check_branch
      %117 = sbr.rel (0) target = $region49
    $region48: #{tpu_custom_call.1} parent=1 // pred_region
      %119 = dma.done [#allocation4], 64
    $region49: #{tpu_custom_call.1} parent=1 // pred_fallthru
      _
    // Predicated region
    $region50: #{tpu_custom_call.1} parent=1 // pred_check
      _
    $region51: #{tpu_custom_call.1} parent=1 // pred_check_branch
      %121 = sbr.rel (0) target = $region53
    $region52: #{tpu_custom_call.1} parent=1 // pred_region
      %123 = dma.done [#allocation7], 6144
    $region53: #{tpu_custom_call.1} parent=1 // pred_fallthru
      _
    // Predicated region
    $region54: #{tpu_custom_call.1} parent=1 // pred_check
      _
    $region55: #{tpu_custom_call.1} parent=1 // pred_check_branch
      %125 = sbr.rel (0) target = $region57
    $region56: #{tpu_custom_call.1} parent=1 // pred_region
      %127 = dma.done [#allocation7], 96
    $region57: #{tpu_custom_call.1} parent=1 // pred_fallthru
      _
    // Predicated region
    $region58: #{tpu_custom_call.1} parent=1 // pred_check
      _
    $region59: #{tpu_custom_call.1} parent=1 // pred_check_branch
      %129 = sbr.rel (0) target = $region61
    $region60: #{tpu_custom_call.1} parent=1 // pred_region
      %131 = dma.done [#allocation10], 12288
    $region61: #{tpu_custom_call.1} parent=1 // pred_fallthru
      _
    // Predicated region
    $region62: #{tpu_custom_call.1} parent=1 // pred_check
      _
    $region63: #{tpu_custom_call.1} parent=1 // pred_check_branch
      %133 = sbr.rel (0) target = $region65
    $region64: #{tpu_custom_call.1} parent=1 // pred_region
      %135 = dma.done [#allocation10], 96
    $region65: #{tpu_custom_call.1} parent=1 // pred_fallthru
      _
    // Predicated region
    $region66: #{tpu_custom_call.1} parent=1 // pred_check
      _
    $region67: #{tpu_custom_call.1} parent=1 // pred_check_branch
      %137 = sbr.rel (0) target = $region69
    $region68: #{tpu_custom_call.1} parent=1 // pred_region
      %139 = dma.done [#allocation13], 6144
    $region69: #{tpu_custom_call.1} parent=1 // pred_fallthru
      _
    // Predicated region
    $region70: #{tpu_custom_call.1} parent=1 // pred_check
      _
    $region71: #{tpu_custom_call.1} parent=1 // pred_check_branch
      %141 = sbr.rel (0) target = $region73
    $region72: #{tpu_custom_call.1} parent=1 // pred_region
      %143 = dma.done [#allocation13], 2048
    $region73: #{tpu_custom_call.1} parent=1 // pred_fallthru
      _
    %v144 = vld [vmem:[#allocation3] sm:$0xf]
    %v145 = vld [vmem:[#allocation6] sm:$0xff]
    %v146 = vld [vmem:[#allocation6 + $0x8] sm:$0xff]
    %v147 = vld [vmem:[#allocation6 + $0x10] sm:$0xff]
    %v148 = vld [vmem:[#allocation6 + $0x18] sm:$0xff]
    %v149 = vld [vmem:[#allocation6 + $0x20] sm:$0xff]
    %v150 = vld [vmem:[#allocation6 + $0x28] sm:$0xff]
    %v151 = vld [vmem:[#allocation6 + $0x30] sm:$0xff]
    %v152 = vld [vmem:[#allocation6 + $0x38] sm:$0xff]
    %v153 = vld [vmem:[#allocation6 + $0x40] sm:$0xff]
    %v154 = vld [vmem:[#allocation6 + $0x48] sm:$0xff]
    %v155 = vld [vmem:[#allocation6 + $0x50] sm:$0xff]
    %v156 = vld [vmem:[#allocation6 + $0x58] sm:$0xff]
    %v157 = vld [vmem:[#allocation6 + $0x60] sm:$0xff]
    %v158 = vld [vmem:[#allocation6 + $0x68] sm:$0xff]
    %v159 = vld [vmem:[#allocation6 + $0x70] sm:$0xff]
    %v160 = vld [vmem:[#allocation6 + $0x78] sm:$0xff]
    %v161 = vld [vmem:[#allocation6 + $0x80] sm:$0xff]
    %v162 = vld [vmem:[#allocation6 + $0x88] sm:$0xff]
    %v163 = vld [vmem:[#allocation6 + $0x90] sm:$0xff]
    %v164 = vld [vmem:[#allocation6 + $0x98] sm:$0xff]
    %v165 = vld [vmem:[#allocation6 + $0xa0] sm:$0xff]
    %v166 = vld [vmem:[#allocation6 + $0xa8] sm:$0xff]
    %v167 = vld [vmem:[#allocation6 + $0xb0] sm:$0xff]
    %v168 = vld [vmem:[#allocation6 + $0xb8] sm:$0xff]
    %v169 = vld [vmem:[#allocation6 + $0xc0] sm:$0xff]
    %v170 = vld [vmem:[#allocation6 + $0xc8] sm:$0xff]
    %v171 = vld [vmem:[#allocation6 + $0xd0] sm:$0xff]
    %v172 = vld [vmem:[#allocation6 + $0xd8] sm:$0xff]
    %v173 = vld [vmem:[#allocation6 + $0xe0] sm:$0xff]
    %v174 = vld [vmem:[#allocation6 + $0xe8] sm:$0xff]
    %v175 = vld [vmem:[#allocation6 + $0xf0] sm:$0xff]
    %v176 = vld [vmem:[#allocation6 + $0xf8] sm:$0xff]
    %v177 = vld [vmem:[#allocation6 + $0x100] sm:$0xff]
    %v178 = vld [vmem:[#allocation6 + $0x108] sm:$0xff]
    %v179 = vld [vmem:[#allocation6 + $0x110] sm:$0xff]
    %v180 = vld [vmem:[#allocation6 + $0x118] sm:$0xff]
    %v181 = vld [vmem:[#allocation6 + $0x120] sm:$0xff]
    %v182 = vld [vmem:[#allocation6 + $0x128] sm:$0xff]
    %v183 = vld [vmem:[#allocation6 + $0x130] sm:$0xff]
    %v184 = vld [vmem:[#allocation6 + $0x138] sm:$0xff]
    %v185 = vld [vmem:[#allocation6 + $0x140] sm:$0xff]
    %v186 = vld [vmem:[#allocation6 + $0x148] sm:$0xff]
    %v187 = vld [vmem:[#allocation6 + $0x150] sm:$0xff]
    %v188 = vld [vmem:[#allocation6 + $0x158] sm:$0xff]
    %v189 = vld [vmem:[#allocation6 + $0x160] sm:$0xff]
    %v190 = vld [vmem:[#allocation6 + $0x168] sm:$0xff]
    %v191 = vld [vmem:[#allocation6 + $0x170] sm:$0xff]
    %v192 = vld [vmem:[#allocation6 + $0x178] sm:$0xff]
    %v193 = vld [vmem:[#allocation8] sm:$0x3f]
    %v195 = vperm.slane %v193, 0
    %v196 = vperm.slane %v193, 1
    %v197 = vperm.slane %v193, 2
    %v198 = vperm.slane %v193, 3
    %v199 = vperm.slane %v193, 4
    %v200 = vperm.slane %v193, 5
    %v255 = vunpack.c.l.b16 %v145
    %v256 = vunpack.c.h.b16 %v145
    %v257 = vunpack.c.l.b16 %v146
    %v258 = vunpack.c.h.b16 %v146
    %v259 = vunpack.c.l.b16 %v147
    %v260 = vunpack.c.h.b16 %v147
    %v261 = vunpack.c.l.b16 %v148
    %v262 = vunpack.c.h.b16 %v148
    %v263 = vunpack.c.l.b16 %v149
    %v264 = vunpack.c.h.b16 %v149
    %v265 = vunpack.c.l.b16 %v150
    %v266 = vunpack.c.h.b16 %v150
    %v267 = vunpack.c.l.b16 %v151
    %v268 = vunpack.c.h.b16 %v151
    %v269 = vunpack.c.l.b16 %v152
    %v270 = vunpack.c.h.b16 %v152
    %v271 = vunpack.c.l.b16 %v153
    %v272 = vunpack.c.h.b16 %v153
    %v273 = vunpack.c.l.b16 %v154
    %v274 = vunpack.c.h.b16 %v154
    %v275 = vunpack.c.l.b16 %v155
    %v276 = vunpack.c.h.b16 %v155
    %v277 = vunpack.c.l.b16 %v156
    %v278 = vunpack.c.h.b16 %v156
    %v279 = vunpack.c.l.b16 %v157
    %v280 = vunpack.c.h.b16 %v157
    %v281 = vunpack.c.l.b16 %v158
    %v282 = vunpack.c.h.b16 %v158
    %v283 = vunpack.c.l.b16 %v159
    %v284 = vunpack.c.h.b16 %v159
    %v285 = vunpack.c.l.b16 %v160
    %v286 = vunpack.c.h.b16 %v160
    %v287 = vunpack.c.l.b16 %v161
    %v288 = vunpack.c.h.b16 %v161
    %v289 = vunpack.c.l.b16 %v162
    %v290 = vunpack.c.h.b16 %v162
    %v291 = vunpack.c.l.b16 %v163
    %v292 = vunpack.c.h.b16 %v163
    %v293 = vunpack.c.l.b16 %v164
    %v294 = vunpack.c.h.b16 %v164
    %v295 = vunpack.c.l.b16 %v165
    %v296 = vunpack.c.h.b16 %v165
    %v297 = vunpack.c.l.b16 %v166
    %v298 = vunpack.c.h.b16 %v166
    %v299 = vunpack.c.l.b16 %v167
    %v300 = vunpack.c.h.b16 %v167
    %v301 = vunpack.c.l.b16 %v168
    %v302 = vunpack.c.h.b16 %v168
    %v303 = vunpack.c.l.b16 %v169
    %v304 = vunpack.c.h.b16 %v169
    %v305 = vunpack.c.l.b16 %v170
    %v306 = vunpack.c.h.b16 %v170
    %v307 = vunpack.c.l.b16 %v171
    %v308 = vunpack.c.h.b16 %v171
    %v309 = vunpack.c.l.b16 %v172
    %v310 = vunpack.c.h.b16 %v172
    %v311 = vunpack.c.l.b16 %v173
    %v312 = vunpack.c.h.b16 %v173
    %v313 = vunpack.c.l.b16 %v174
    %v314 = vunpack.c.h.b16 %v174
    %v315 = vunpack.c.l.b16 %v175
    %v316 = vunpack.c.h.b16 %v175
    %v317 = vunpack.c.l.b16 %v176
    %v318 = vunpack.c.h.b16 %v176
    %v319 = vunpack.c.l.b16 %v177
    %v320 = vunpack.c.h.b16 %v177
    %v321 = vunpack.c.l.b16 %v178
    %v322 = vunpack.c.h.b16 %v178
    %v323 = vunpack.c.l.b16 %v179
    %v324 = vunpack.c.h.b16 %v179
    %v325 = vunpack.c.l.b16 %v180
    %v326 = vunpack.c.h.b16 %v180
    %v327 = vunpack.c.l.b16 %v181
    %v328 = vunpack.c.h.b16 %v181
    %v329 = vunpack.c.l.b16 %v182
    %v330 = vunpack.c.h.b16 %v182
    %v331 = vunpack.c.l.b16 %v183
    %v332 = vunpack.c.h.b16 %v183
    %v333 = vunpack.c.l.b16 %v184
    %v334 = vunpack.c.h.b16 %v184
    %v335 = vunpack.c.l.b16 %v185
    %v336 = vunpack.c.h.b16 %v185
    %v337 = vunpack.c.l.b16 %v186
    %v338 = vunpack.c.h.b16 %v186
    %v339 = vunpack.c.l.b16 %v187
    %v340 = vunpack.c.h.b16 %v187
    %v341 = vunpack.c.l.b16 %v188
    %v342 = vunpack.c.h.b16 %v188
    %v343 = vunpack.c.l.b16 %v189
    %v344 = vunpack.c.h.b16 %v189
    %v345 = vunpack.c.l.b16 %v190
    %v346 = vunpack.c.h.b16 %v190
    %v347 = vunpack.c.l.b16 %v191
    %v348 = vunpack.c.h.b16 %v191
    %v349 = vunpack.c.l.b16 %v192
    %v350 = vunpack.c.h.b16 %v192
    %v351 = vpack.c.b16 %v261, %v255
    %v352 = vpack.c.b16 %v262, %v256
    %v353 = vpack.c.b16 %v263, %v257
    %v354 = vpack.c.b16 %v264, %v258
    %v355 = vpack.c.b16 %v265, %v259
    %v356 = vpack.c.b16 %v266, %v260
    %v357 = vpack.c.b16 %v273, %v267
    %v358 = vpack.c.b16 %v274, %v268
    %v359 = vpack.c.b16 %v275, %v269
    %v360 = vpack.c.b16 %v276, %v270
    %v361 = vpack.c.b16 %v277, %v271
    %v362 = vpack.c.b16 %v278, %v272
    %v363 = vpack.c.b16 %v285, %v279
    %v364 = vpack.c.b16 %v286, %v280
    %v365 = vpack.c.b16 %v287, %v281
    %v366 = vpack.c.b16 %v288, %v282
    %v367 = vpack.c.b16 %v289, %v283
    %v368 = vpack.c.b16 %v290, %v284
    %v369 = vpack.c.b16 %v297, %v291
    %v370 = vpack.c.b16 %v298, %v292
    %v371 = vpack.c.b16 %v299, %v293
    %v372 = vpack.c.b16 %v300, %v294
    %v373 = vpack.c.b16 %v301, %v295
    %v374 = vpack.c.b16 %v302, %v296
    %v375 = vpack.c.b16 %v309, %v303
    %v376 = vpack.c.b16 %v310, %v304
    %v377 = vpack.c.b16 %v311, %v305
    %v378 = vpack.c.b16 %v312, %v306
    %v379 = vpack.c.b16 %v313, %v307
    %v380 = vpack.c.b16 %v314, %v308
    %v381 = vpack.c.b16 %v321, %v315
    %v382 = vpack.c.b16 %v322, %v316
    %v383 = vpack.c.b16 %v323, %v317
    %v384 = vpack.c.b16 %v324, %v318
    %v385 = vpack.c.b16 %v325, %v319
    %v386 = vpack.c.b16 %v326, %v320
    %v387 = vpack.c.b16 %v333, %v327
    %v388 = vpack.c.b16 %v334, %v328
    %v389 = vpack.c.b16 %v335, %v329
    %v390 = vpack.c.b16 %v336, %v330
    %v391 = vpack.c.b16 %v337, %v331
    %v392 = vpack.c.b16 %v338, %v332
    %v393 = vpack.c.b16 %v345, %v339
    %v394 = vpack.c.b16 %v346, %v340
    %v395 = vpack.c.b16 %v347, %v341
    %v396 = vpack.c.b16 %v348, %v342
    %v397 = vpack.c.b16 %v349, %v343
    %v398 = vpack.c.b16 %v350, %v344
    %447 = vmatpush.bf16.msra.mxu0 %v393
    %448 = vmatpush.bf16.msra.mxu0 %v387
    %449 = vmatpush.bf16.msra.mxu0 %v381
    %450 = vmatpush.bf16.msra.mxu0 %v375
    %451 = vmatpush.bf16.msra.mxu0 %v369
    %452 = vmatpush.bf16.msra.mxu0 %v363
    %453 = vmatpush.bf16.msra.mxu0 %v357
    %454 = vmatpush.bf16.msra.mxu0 %v351
    %455 = vmatmul.bf16.gmra.mxu0 %v144
    %v456 = vpop.f32.mrf.mxu0
    %v457 = vadd.f32 %v195, %v456
    %v458 = vpop.f32.mrf.mxu0
    %459 = vdwg.mxu0
    %460 = vmatpush.bf16.msra.mxu0 %v394
    %461 = vmatpush.bf16.msra.mxu0 %v388
    %462 = vmatpush.bf16.msra.mxu0 %v382
    %463 = vmatpush.bf16.msra.mxu0 %v376
    %464 = vmatpush.bf16.msra.mxu0 %v370
    %465 = vmatpush.bf16.msra.mxu0 %v364
    %466 = vmatpush.bf16.msra.mxu0 %v358
    %467 = vmatpush.bf16.msra.mxu0 %v352
    %468 = vmatmul.bf16.gmra.mxu0 %v144
    %v469 = vpop.f32.mrf.mxu0
    %v470 = vadd.f32 %v196, %v469
    %v471 = vpop.f32.mrf.mxu0
    %472 = vdwg.mxu0
    %473 = vmatpush.bf16.msra.mxu0 %v395
    %474 = vmatpush.bf16.msra.mxu0 %v389
    %475 = vmatpush.bf16.msra.mxu0 %v383
    %476 = vmatpush.bf16.msra.mxu0 %v377
    %477 = vmatpush.bf16.msra.mxu0 %v371
    %478 = vmatpush.bf16.msra.mxu0 %v365
    %479 = vmatpush.bf16.msra.mxu0 %v359
    %480 = vmatpush.bf16.msra.mxu0 %v353
    %481 = vmatmul.bf16.gmra.mxu0 %v144
    %v482 = vpop.f32.mrf.mxu0
    %v483 = vadd.f32 %v197, %v482
    %v484 = vpop.f32.mrf.mxu0
    %485 = vdwg.mxu0
    %486 = vmatpush.bf16.msra.mxu0 %v396
    %487 = vmatpush.bf16.msra.mxu0 %v390
    %488 = vmatpush.bf16.msra.mxu0 %v384
    %489 = vmatpush.bf16.msra.mxu0 %v378
    %490 = vmatpush.bf16.msra.mxu0 %v372
    %491 = vmatpush.bf16.msra.mxu0 %v366
    %492 = vmatpush.bf16.msra.mxu0 %v360
    %493 = vmatpush.bf16.msra.mxu0 %v354
    %494 = vmatmul.bf16.gmra.mxu0 %v144
    %v495 = vpop.f32.mrf.mxu0
    %v496 = vadd.f32 %v198, %v495
    %v497 = vpop.f32.mrf.mxu0
    %498 = vdwg.mxu0
    %499 = vmatpush.bf16.msra.mxu0 %v397
    %500 = vmatpush.bf16.msra.mxu0 %v391
    %501 = vmatpush.bf16.msra.mxu0 %v385
    %502 = vmatpush.bf16.msra.mxu0 %v379
    %503 = vmatpush.bf16.msra.mxu0 %v373
    %504 = vmatpush.bf16.msra.mxu0 %v367
    %505 = vmatpush.bf16.msra.mxu0 %v361
    %506 = vmatpush.bf16.msra.mxu0 %v355
    %507 = vmatmul.bf16.gmra.mxu0 %v144
    %v508 = vpop.f32.mrf.mxu0
    %v509 = vadd.f32 %v199, %v508
    %v510 = vpop.f32.mrf.mxu0
    %511 = vdwg.mxu0
    %512 = vmatpush.bf16.msra.mxu0 %v398
    %513 = vmatpush.bf16.msra.mxu0 %v392
    %514 = vmatpush.bf16.msra.mxu0 %v386
    %515 = vmatpush.bf16.msra.mxu0 %v380
    %516 = vmatpush.bf16.msra.mxu0 %v374
    %517 = vmatpush.bf16.msra.mxu0 %v368
    %518 = vmatpush.bf16.msra.mxu0 %v362
    %519 = vmatpush.bf16.msra.mxu0 %v356
    %520 = vmatmul.bf16.gmra.mxu0 %v144
    %v521 = vpop.f32.mrf.mxu0
    %v522 = vadd.f32 %v200, %v521
    %v523 = vpop.f32.mrf.mxu0
    %524 = vdwg.mxu0
    %v525 = vxor.u32 %v457, 2147483648
    %v526 = vxor.u32 %v470, 2147483648
    %v527 = vmul.f32 %v525, 1.442695
    %v528 = vpow.pop %v527
    %v529 = vmul.f32 %v526, 1.442695
    %v530 = vpow.pop %v529
    %v531 = vadd.f32 %v528, 1.0
    %v532 = vadd.f32 %v530, 1.0
    %v533 = vrcp.pop %v531
    %v534 = vmul.f32 %v531, %v533
    %v535 = vsub.f32 1.0, %v534
    %v536 = vmul.f32 %v533, %v535
    %v537 = vadd.f32 %v533, %v536
    %vm538 = vweird.f32 %v531
    %vm539 = vweird.f32 %v533
    %vm540 = vmor %vm538, %vm539
    %v541 = vsel %vm540, %v533, %v537
    %v542 = vand.u32 2147483647, %v531
    %vm543 = vcmp.eq.f32.partialorder %v542, 8.507059e+37
    %v544 = vand.u32 %v531, 2147483648
    %v545 = vor.u32 1.1754944e-38, %v544
    %v546 = vsel %vm543, %v545, %v541
    %v547 = vmul.f32 1.0, %v546
    %v548 = vrcp.pop %v532
    %v549 = vmul.f32 %v532, %v548
    %v550 = vsub.f32 1.0, %v549
    %v551 = vmul.f32 %v548, %v550
    %v552 = vadd.f32 %v548, %v551
    %vm553 = vweird.f32 %v532
    %vm554 = vweird.f32 %v548
    %vm555 = vmor %vm553, %vm554
    %v556 = vsel %vm555, %v548, %v552
    %v557 = vand.u32 2147483647, %v532
    %vm558 = vcmp.eq.f32.partialorder %v557, 8.507059e+37
    %v559 = vand.u32 %v532, 2147483648
    %v560 = vor.u32 1.1754944e-38, %v559
    %v561 = vsel %vm558, %v560, %v556
    %v562 = vmul.f32 1.0, %v561
    %v563 = vtanh.pop %v483
    %v564 = vtanh.pop %v496
    %v565 = vxor.u32 %v509, 2147483648
    %v566 = vxor.u32 %v522, 2147483648
    %v567 = vmul.f32 %v565, 1.442695
    %v568 = vpow.pop %v567
    %v569 = vmul.f32 %v566, 1.442695
    %v570 = vpow.pop %v569
    %v571 = vadd.f32 %v568, 1.0
    %v572 = vadd.f32 %v570, 1.0
    %v573 = vrcp.pop %v571
    %v574 = vmul.f32 %v571, %v573
    %v575 = vsub.f32 1.0, %v574
    %v576 = vmul.f32 %v573, %v575
    %v577 = vadd.f32 %v573, %v576
    %vm578 = vweird.f32 %v571
    %vm579 = vweird.f32 %v573
    %vm580 = vmor %vm578, %vm579
    %v581 = vsel %vm580, %v573, %v577
    %v582 = vand.u32 2147483647, %v571
    %vm583 = vcmp.eq.f32.partialorder %v582, 8.507059e+37
    %v584 = vand.u32 %v571, 2147483648
    %v585 = vor.u32 1.1754944e-38, %v584
    %v586 = vsel %vm583, %v585, %v581
    %v587 = vmul.f32 1.0, %v586
    %v588 = vrcp.pop %v572
    %v589 = vmul.f32 %v572, %v588
    %v590 = vsub.f32 1.0, %v589
    %v591 = vmul.f32 %v588, %v590
    %v592 = vadd.f32 %v588, %v591
    %vm593 = vweird.f32 %v572
    %vm594 = vweird.f32 %v588
    %vm595 = vmor %vm593, %vm594
    %v596 = vsel %vm595, %v588, %v592
    %v597 = vand.u32 2147483647, %v572
    %vm598 = vcmp.eq.f32.partialorder %v597, 8.507059e+37
    %v599 = vand.u32 %v572, 2147483648
    %v600 = vor.u32 1.1754944e-38, %v599
    %v601 = vsel %vm598, %v600, %v596
    %v602 = vmul.f32 1.0, %v601
    %v603 = vmul.f32 %v547, %v563
    %v604 = vmul.f32 %v562, %v564
    %v605 = vtanh.pop %v603
    %v606 = vtanh.pop %v604
    %v607 = vmul.f32 %v587, %v605
    %v608 = vmul.f32 %v602, %v606
    %v609 = vpack.c.bf16 %v607, %v607
    %v610 = vpack.c.bf16 %v608, %v608
    %v611 = vld [vmem:[#allocation9] sm:$0xff]
    %v612 = vld [vmem:[#allocation9 + $0x8] sm:$0xff]
    %v613 = vld [vmem:[#allocation9 + $0x10] sm:$0xff]
    %v614 = vld [vmem:[#allocation9 + $0x18] sm:$0xff]
    %v615 = vld [vmem:[#allocation9 + $0x20] sm:$0xff]
    %v616 = vld [vmem:[#allocation9 + $0x28] sm:$0xff]
    %v617 = vld [vmem:[#allocation9 + $0x30] sm:$0xff]
    %v618 = vld [vmem:[#allocation9 + $0x38] sm:$0xff]
    %v619 = vld [vmem:[#allocation9 + $0x40] sm:$0xff]
    %v620 = vld [vmem:[#allocation9 + $0x48] sm:$0xff]
    %v621 = vld [vmem:[#allocation9 + $0x50] sm:$0xff]
    %v622 = vld [vmem:[#allocation9 + $0x58] sm:$0xff]
    %v623 = vld [vmem:[#allocation9 + $0x60] sm:$0xff]
    %v624 = vld [vmem:[#allocation9 + $0x68] sm:$0xff]
    %v625 = vld [vmem:[#allocation9 + $0x70] sm:$0xff]
    %v626 = vld [vmem:[#allocation9 + $0x78] sm:$0xff]
    %v627 = vld [vmem:[#allocation9 + $0x80] sm:$0xff]
    %v628 = vld [vmem:[#allocation9 + $0x88] sm:$0xff]
    %v629 = vld [vmem:[#allocation9 + $0x90] sm:$0xff]
    %v630 = vld [vmem:[#allocation9 + $0x98] sm:$0xff]
    %v631 = vld [vmem:[#allocation9 + $0xa0] sm:$0xff]
    %v632 = vld [vmem:[#allocation9 + $0xa8] sm:$0xff]
    %v633 = vld [vmem:[#allocation9 + $0xb0] sm:$0xff]
    %v634 = vld [vmem:[#allocation9 + $0xb8] sm:$0xff]
    %v635 = vld [vmem:[#allocation9 + $0xc0] sm:$0xff]
    %v636 = vld [vmem:[#allocation9 + $0xc8] sm:$0xff]
    %v637 = vld [vmem:[#allocation9 + $0xd0] sm:$0xff]
    %v638 = vld [vmem:[#allocation9 + $0xd8] sm:$0xff]
    %v639 = vld [vmem:[#allocation9 + $0xe0] sm:$0xff]
    %v640 = vld [vmem:[#allocation9 + $0xe8] sm:$0xff]
    %v641 = vld [vmem:[#allocation9 + $0xf0] sm:$0xff]
    %v642 = vld [vmem:[#allocation9 + $0xf8] sm:$0xff]
    %v643 = vld [vmem:[#allocation9 + $0x100] sm:$0xff]
    %v644 = vld [vmem:[#allocation9 + $0x108] sm:$0xff]
    %v645 = vld [vmem:[#allocation9 + $0x110] sm:$0xff]
    %v646 = vld [vmem:[#allocation9 + $0x118] sm:$0xff]
    %v647 = vld [vmem:[#allocation9 + $0x120] sm:$0xff]
    %v648 = vld [vmem:[#allocation9 + $0x128] sm:$0xff]
    %v649 = vld [vmem:[#allocation9 + $0x130] sm:$0xff]
    %v650 = vld [vmem:[#allocation9 + $0x138] sm:$0xff]
    %v651 = vld [vmem:[#allocation9 + $0x140] sm:$0xff]
    %v652 = vld [vmem:[#allocation9 + $0x148] sm:$0xff]
    %v653 = vld [vmem:[#allocation9 + $0x150] sm:$0xff]
    %v654 = vld [vmem:[#allocation9 + $0x158] sm:$0xff]
    %v655 = vld [vmem:[#allocation9 + $0x160] sm:$0xff]
    %v656 = vld [vmem:[#allocation9 + $0x168] sm:$0xff]
    %v657 = vld [vmem:[#allocation9 + $0x170] sm:$0xff]
    %v658 = vld [vmem:[#allocation9 + $0x178] sm:$0xff]
    %v659 = vld [vmem:[#allocation9 + $0x180] sm:$0xff]
    %v660 = vld [vmem:[#allocation9 + $0x188] sm:$0xff]
    %v661 = vld [vmem:[#allocation9 + $0x190] sm:$0xff]
    %v662 = vld [vmem:[#allocation9 + $0x198] sm:$0xff]
    %v663 = vld [vmem:[#allocation9 + $0x1a0] sm:$0xff]
    %v664 = vld [vmem:[#allocation9 + $0x1a8] sm:$0xff]
    %v665 = vld [vmem:[#allocation9 + $0x1b0] sm:$0xff]
    %v666 = vld [vmem:[#allocation9 + $0x1b8] sm:$0xff]
    %v667 = vld [vmem:[#allocation9 + $0x1c0] sm:$0xff]
    %v668 = vld [vmem:[#allocation9 + $0x1c8] sm:$0xff]
    %v669 = vld [vmem:[#allocation9 + $0x1d0] sm:$0xff]
    %v670 = vld [vmem:[#allocation9 + $0x1d8] sm:$0xff]
    %v671 = vld [vmem:[#allocation9 + $0x1e0] sm:$0xff]
    %v672 = vld [vmem:[#allocation9 + $0x1e8] sm:$0xff]
    %v673 = vld [vmem:[#allocation9 + $0x1f0] sm:$0xff]
    %v674 = vld [vmem:[#allocation9 + $0x1f8] sm:$0xff]
    %v675 = vld [vmem:[#allocation9 + $0x200] sm:$0xff]
    %v676 = vld [vmem:[#allocation9 + $0x208] sm:$0xff]
    %v677 = vld [vmem:[#allocation9 + $0x210] sm:$0xff]
    %v678 = vld [vmem:[#allocation9 + $0x218] sm:$0xff]
    %v679 = vld [vmem:[#allocation9 + $0x220] sm:$0xff]
    %v680 = vld [vmem:[#allocation9 + $0x228] sm:$0xff]
    %v681 = vld [vmem:[#allocation9 + $0x230] sm:$0xff]
    %v682 = vld [vmem:[#allocation9 + $0x238] sm:$0xff]
    %v683 = vld [vmem:[#allocation9 + $0x240] sm:$0xff]
    %v684 = vld [vmem:[#allocation9 + $0x248] sm:$0xff]
    %v685 = vld [vmem:[#allocation9 + $0x250] sm:$0xff]
    %v686 = vld [vmem:[#allocation9 + $0x258] sm:$0xff]
    %v687 = vld [vmem:[#allocation9 + $0x260] sm:$0xff]
    %v688 = vld [vmem:[#allocation9 + $0x268] sm:$0xff]
    %v689 = vld [vmem:[#allocation9 + $0x270] sm:$0xff]
    %v690 = vld [vmem:[#allocation9 + $0x278] sm:$0xff]
    %v691 = vld [vmem:[#allocation9 + $0x280] sm:$0xff]
    %v692 = vld [vmem:[#allocation9 + $0x288] sm:$0xff]
    %v693 = vld [vmem:[#allocation9 + $0x290] sm:$0xff]
    %v694 = vld [vmem:[#allocation9 + $0x298] sm:$0xff]
    %v695 = vld [vmem:[#allocation9 + $0x2a0] sm:$0xff]
    %v696 = vld [vmem:[#allocation9 + $0x2a8] sm:$0xff]
    %v697 = vld [vmem:[#allocation9 + $0x2b0] sm:$0xff]
    %v698 = vld [vmem:[#allocation9 + $0x2b8] sm:$0xff]
    %v699 = vld [vmem:[#allocation9 + $0x2c0] sm:$0xff]
    %v700 = vld [vmem:[#allocation9 + $0x2c8] sm:$0xff]
    %v701 = vld [vmem:[#allocation9 + $0x2d0] sm:$0xff]
    %v702 = vld [vmem:[#allocation9 + $0x2d8] sm:$0xff]
    %v703 = vld [vmem:[#allocation9 + $0x2e0] sm:$0xff]
    %v704 = vld [vmem:[#allocation9 + $0x2e8] sm:$0xff]
    %v705 = vld [vmem:[#allocation9 + $0x2f0] sm:$0xff]
    %v706 = vld [vmem:[#allocation9 + $0x2f8] sm:$0xff]
    %v707 = vld [vmem:[#allocation11] sm:$0x3f]
    %v709 = vperm.slane %v707, 0
    %v710 = vperm.slane %v707, 1
    %v711 = vperm.slane %v707, 2
    %v712 = vperm.slane %v707, 3
    %v713 = vperm.slane %v707, 4
    %v714 = vperm.slane %v707, 5
    %v817 = vunpack.c.l.b16 %v611
    %v818 = vunpack.c.h.b16 %v611
    %v819 = vunpack.c.l.b16 %v612
    %v820 = vunpack.c.h.b16 %v612
    %v821 = vunpack.c.l.b16 %v613
    %v822 = vunpack.c.h.b16 %v613
    %v823 = vunpack.c.l.b16 %v614
    %v824 = vunpack.c.h.b16 %v614
    %v825 = vunpack.c.l.b16 %v615
    %v826 = vunpack.c.h.b16 %v615
    %v827 = vunpack.c.l.b16 %v616
    %v828 = vunpack.c.h.b16 %v616
    %v829 = vunpack.c.l.b16 %v617
    %v830 = vunpack.c.h.b16 %v617
    %v831 = vunpack.c.l.b16 %v618
    %v832 = vunpack.c.h.b16 %v618
    %v833 = vunpack.c.l.b16 %v619
    %v834 = vunpack.c.h.b16 %v619
    %v835 = vunpack.c.l.b16 %v620
    %v836 = vunpack.c.h.b16 %v620
    %v837 = vunpack.c.l.b16 %v621
    %v838 = vunpack.c.h.b16 %v621
    %v839 = vunpack.c.l.b16 %v622
    %v840 = vunpack.c.h.b16 %v622
    %v841 = vunpack.c.l.b16 %v623
    %v842 = vunpack.c.h.b16 %v623
    %v843 = vunpack.c.l.b16 %v624
    %v844 = vunpack.c.h.b16 %v624
    %v845 = vunpack.c.l.b16 %v625
    %v846 = vunpack.c.h.b16 %v625
    %v847 = vunpack.c.l.b16 %v626
    %v848 = vunpack.c.h.b16 %v626
    %v849 = vunpack.c.l.b16 %v627
    %v850 = vunpack.c.h.b16 %v627
    %v851 = vunpack.c.l.b16 %v628
    %v852 = vunpack.c.h.b16 %v628
    %v853 = vunpack.c.l.b16 %v629
    %v854 = vunpack.c.h.b16 %v629
    %v855 = vunpack.c.l.b16 %v630
    %v856 = vunpack.c.h.b16 %v630
    %v857 = vunpack.c.l.b16 %v631
    %v858 = vunpack.c.h.b16 %v631
    %v859 = vunpack.c.l.b16 %v632
    %v860 = vunpack.c.h.b16 %v632
    %v861 = vunpack.c.l.b16 %v633
    %v862 = vunpack.c.h.b16 %v633
    %v863 = vunpack.c.l.b16 %v634
    %v864 = vunpack.c.h.b16 %v634
    %v865 = vunpack.c.l.b16 %v635
    %v866 = vunpack.c.h.b16 %v635
    %v867 = vunpack.c.l.b16 %v636
    %v868 = vunpack.c.h.b16 %v636
    %v869 = vunpack.c.l.b16 %v637
    %v870 = vunpack.c.h.b16 %v637
    %v871 = vunpack.c.l.b16 %v638
    %v872 = vunpack.c.h.b16 %v638
    %v873 = vunpack.c.l.b16 %v639
    %v874 = vunpack.c.h.b16 %v639
    %v875 = vunpack.c.l.b16 %v640
    %v876 = vunpack.c.h.b16 %v640
    %v877 = vunpack.c.l.b16 %v641
    %v878 = vunpack.c.h.b16 %v641
    %v879 = vunpack.c.l.b16 %v642
    %v880 = vunpack.c.h.b16 %v642
    %v881 = vunpack.c.l.b16 %v643
    %v882 = vunpack.c.h.b16 %v643
    %v883 = vunpack.c.l.b16 %v644
    %v884 = vunpack.c.h.b16 %v644
    %v885 = vunpack.c.l.b16 %v645
    %v886 = vunpack.c.h.b16 %v645
    %v887 = vunpack.c.l.b16 %v646
    %v888 = vunpack.c.h.b16 %v646
    %v889 = vunpack.c.l.b16 %v647
    %v890 = vunpack.c.h.b16 %v647
    %v891 = vunpack.c.l.b16 %v648
    %v892 = vunpack.c.h.b16 %v648
    %v893 = vunpack.c.l.b16 %v649
    %v894 = vunpack.c.h.b16 %v649
    %v895 = vunpack.c.l.b16 %v650
    %v896 = vunpack.c.h.b16 %v650
    %v897 = vunpack.c.l.b16 %v651
    %v898 = vunpack.c.h.b16 %v651
    %v899 = vunpack.c.l.b16 %v652
    %v900 = vunpack.c.h.b16 %v652
    %v901 = vunpack.c.l.b16 %v653
    %v902 = vunpack.c.h.b16 %v653
    %v903 = vunpack.c.l.b16 %v654
    %v904 = vunpack.c.h.b16 %v654
    %v905 = vunpack.c.l.b16 %v655
    %v906 = vunpack.c.h.b16 %v655
    %v907 = vunpack.c.l.b16 %v656
    %v908 = vunpack.c.h.b16 %v656
    %v909 = vunpack.c.l.b16 %v657
    %v910 = vunpack.c.h.b16 %v657
    %v911 = vunpack.c.l.b16 %v658
    %v912 = vunpack.c.h.b16 %v658
    %v913 = vunpack.c.l.b16 %v659
    %v914 = vunpack.c.h.b16 %v659
    %v915 = vunpack.c.l.b16 %v660
    %v916 = vunpack.c.h.b16 %v660
    %v917 = vunpack.c.l.b16 %v661
    %v918 = vunpack.c.h.b16 %v661
    %v919 = vunpack.c.l.b16 %v662
    %v920 = vunpack.c.h.b16 %v662
    %v921 = vunpack.c.l.b16 %v663
    %v922 = vunpack.c.h.b16 %v663
    %v923 = vunpack.c.l.b16 %v664
    %v924 = vunpack.c.h.b16 %v664
    %v925 = vunpack.c.l.b16 %v665
    %v926 = vunpack.c.h.b16 %v665
    %v927 = vunpack.c.l.b16 %v666
    %v928 = vunpack.c.h.b16 %v666
    %v929 = vunpack.c.l.b16 %v667
    %v930 = vunpack.c.h.b16 %v667
    %v931 = vunpack.c.l.b16 %v668
    %v932 = vunpack.c.h.b16 %v668
    %v933 = vunpack.c.l.b16 %v669
    %v934 = vunpack.c.h.b16 %v669
    %v935 = vunpack.c.l.b16 %v670
    %v936 = vunpack.c.h.b16 %v670
    %v937 = vunpack.c.l.b16 %v671
    %v938 = vunpack.c.h.b16 %v671
    %v939 = vunpack.c.l.b16 %v672
    %v940 = vunpack.c.h.b16 %v672
    %v941 = vunpack.c.l.b16 %v673
    %v942 = vunpack.c.h.b16 %v673
    %v943 = vunpack.c.l.b16 %v674
    %v944 = vunpack.c.h.b16 %v674
    %v945 = vunpack.c.l.b16 %v675
    %v946 = vunpack.c.h.b16 %v675
    %v947 = vunpack.c.l.b16 %v676
    %v948 = vunpack.c.h.b16 %v676
    %v949 = vunpack.c.l.b16 %v677
    %v950 = vunpack.c.h.b16 %v677
    %v951 = vunpack.c.l.b16 %v678
    %v952 = vunpack.c.h.b16 %v678
    %v953 = vunpack.c.l.b16 %v679
    %v954 = vunpack.c.h.b16 %v679
    %v955 = vunpack.c.l.b16 %v680
    %v956 = vunpack.c.h.b16 %v680
    %v957 = vunpack.c.l.b16 %v681
    %v958 = vunpack.c.h.b16 %v681
    %v959 = vunpack.c.l.b16 %v682
    %v960 = vunpack.c.h.b16 %v682
    %v961 = vunpack.c.l.b16 %v683
    %v962 = vunpack.c.h.b16 %v683
    %v963 = vunpack.c.l.b16 %v684
    %v964 = vunpack.c.h.b16 %v684
    %v965 = vunpack.c.l.b16 %v685
    %v966 = vunpack.c.h.b16 %v685
    %v967 = vunpack.c.l.b16 %v686
    %v968 = vunpack.c.h.b16 %v686
    %v969 = vunpack.c.l.b16 %v687
    %v970 = vunpack.c.h.b16 %v687
    %v971 = vunpack.c.l.b16 %v688
    %v972 = vunpack.c.h.b16 %v688
    %v973 = vunpack.c.l.b16 %v689
    %v974 = vunpack.c.h.b16 %v689
    %v975 = vunpack.c.l.b16 %v690
    %v976 = vunpack.c.h.b16 %v690
    %v977 = vunpack.c.l.b16 %v691
    %v978 = vunpack.c.h.b16 %v691
    %v979 = vunpack.c.l.b16 %v692
    %v980 = vunpack.c.h.b16 %v692
    %v981 = vunpack.c.l.b16 %v693
    %v982 = vunpack.c.h.b16 %v693
    %v983 = vunpack.c.l.b16 %v694
    %v984 = vunpack.c.h.b16 %v694
    %v985 = vunpack.c.l.b16 %v695
    %v986 = vunpack.c.h.b16 %v695
    %v987 = vunpack.c.l.b16 %v696
    %v988 = vunpack.c.h.b16 %v696
    %v989 = vunpack.c.l.b16 %v697
    %v990 = vunpack.c.h.b16 %v697
    %v991 = vunpack.c.l.b16 %v698
    %v992 = vunpack.c.h.b16 %v698
    %v993 = vunpack.c.l.b16 %v699
    %v994 = vunpack.c.h.b16 %v699
    %v995 = vunpack.c.l.b16 %v700
    %v996 = vunpack.c.h.b16 %v700
    %v997 = vunpack.c.l.b16 %v701
    %v998 = vunpack.c.h.b16 %v701
    %v999 = vunpack.c.l.b16 %v702
    %v1000 = vunpack.c.h.b16 %v702
    %v1001 = vunpack.c.l.b16 %v703
    %v1002 = vunpack.c.h.b16 %v703
    %v1003 = vunpack.c.l.b16 %v704
    %v1004 = vunpack.c.h.b16 %v704
    %v1005 = vunpack.c.l.b16 %v705
    %v1006 = vunpack.c.h.b16 %v705
    %v1007 = vunpack.c.l.b16 %v706
    %v1008 = vunpack.c.h.b16 %v706
    %v1009 = vpack.c.b16 %v823, %v817
    %v1010 = vpack.c.b16 %v824, %v818
    %v1011 = vpack.c.b16 %v825, %v819
    %v1012 = vpack.c.b16 %v826, %v820
    %v1013 = vpack.c.b16 %v827, %v821
    %v1014 = vpack.c.b16 %v828, %v822
    %v1015 = vpack.c.b16 %v835, %v829
    %v1016 = vpack.c.b16 %v836, %v830
    %v1017 = vpack.c.b16 %v837, %v831
    %v1018 = vpack.c.b16 %v838, %v832
    %v1019 = vpack.c.b16 %v839, %v833
    %v1020 = vpack.c.b16 %v840, %v834
    %v1021 = vpack.c.b16 %v847, %v841
    %v1022 = vpack.c.b16 %v848, %v842
    %v1023 = vpack.c.b16 %v849, %v843
    %v1024 = vpack.c.b16 %v850, %v844
    %v1025 = vpack.c.b16 %v851, %v845
    %v1026 = vpack.c.b16 %v852, %v846
    %v1027 = vpack.c.b16 %v859, %v853
    %v1028 = vpack.c.b16 %v860, %v854
    %v1029 = vpack.c.b16 %v861, %v855
    %v1030 = vpack.c.b16 %v862, %v856
    %v1031 = vpack.c.b16 %v863, %v857
    %v1032 = vpack.c.b16 %v864, %v858
    %v1033 = vpack.c.b16 %v871, %v865
    %v1034 = vpack.c.b16 %v872, %v866
    %v1035 = vpack.c.b16 %v873, %v867
    %v1036 = vpack.c.b16 %v874, %v868
    %v1037 = vpack.c.b16 %v875, %v869
    %v1038 = vpack.c.b16 %v876, %v870
    %v1039 = vpack.c.b16 %v883, %v877
    %v1040 = vpack.c.b16 %v884, %v878
    %v1041 = vpack.c.b16 %v885, %v879
    %v1042 = vpack.c.b16 %v886, %v880
    %v1043 = vpack.c.b16 %v887, %v881
    %v1044 = vpack.c.b16 %v888, %v882
    %v1045 = vpack.c.b16 %v895, %v889
    %v1046 = vpack.c.b16 %v896, %v890
    %v1047 = vpack.c.b16 %v897, %v891
    %v1048 = vpack.c.b16 %v898, %v892
    %v1049 = vpack.c.b16 %v899, %v893
    %v1050 = vpack.c.b16 %v900, %v894
    %v1051 = vpack.c.b16 %v907, %v901
    %v1052 = vpack.c.b16 %v908, %v902
    %v1053 = vpack.c.b16 %v909, %v903
    %v1054 = vpack.c.b16 %v910, %v904
    %v1055 = vpack.c.b16 %v911, %v905
    %v1056 = vpack.c.b16 %v912, %v906
    %v1057 = vpack.c.b16 %v919, %v913
    %v1058 = vpack.c.b16 %v920, %v914
    %v1059 = vpack.c.b16 %v921, %v915
    %v1060 = vpack.c.b16 %v922, %v916
    %v1061 = vpack.c.b16 %v923, %v917
    %v1062 = vpack.c.b16 %v924, %v918
    %v1063 = vpack.c.b16 %v931, %v925
    %v1064 = vpack.c.b16 %v932, %v926
    %v1065 = vpack.c.b16 %v933, %v927
    %v1066 = vpack.c.b16 %v934, %v928
    %v1067 = vpack.c.b16 %v935, %v929
    %v1068 = vpack.c.b16 %v936, %v930
    %v1069 = vpack.c.b16 %v943, %v937
    %v1070 = vpack.c.b16 %v944, %v938
    %v1071 = vpack.c.b16 %v945, %v939
    %v1072 = vpack.c.b16 %v946, %v940
    %v1073 = vpack.c.b16 %v947, %v941
    %v1074 = vpack.c.b16 %v948, %v942
    %v1075 = vpack.c.b16 %v955, %v949
    %v1076 = vpack.c.b16 %v956, %v950
    %v1077 = vpack.c.b16 %v957, %v951
    %v1078 = vpack.c.b16 %v958, %v952
    %v1079 = vpack.c.b16 %v959, %v953
    %v1080 = vpack.c.b16 %v960, %v954
    %v1081 = vpack.c.b16 %v967, %v961
    %v1082 = vpack.c.b16 %v968, %v962
    %v1083 = vpack.c.b16 %v969, %v963
    %v1084 = vpack.c.b16 %v970, %v964
    %v1085 = vpack.c.b16 %v971, %v965
    %v1086 = vpack.c.b16 %v972, %v966
    %v1087 = vpack.c.b16 %v979, %v973
    %v1088 = vpack.c.b16 %v980, %v974
    %v1089 = vpack.c.b16 %v981, %v975
    %v1090 = vpack.c.b16 %v982, %v976
    %v1091 = vpack.c.b16 %v983, %v977
    %v1092 = vpack.c.b16 %v984, %v978
    %v1093 = vpack.c.b16 %v991, %v985
    %v1094 = vpack.c.b16 %v992, %v986
    %v1095 = vpack.c.b16 %v993, %v987
    %v1096 = vpack.c.b16 %v994, %v988
    %v1097 = vpack.c.b16 %v995, %v989
    %v1098 = vpack.c.b16 %v996, %v990
    %v1099 = vpack.c.b16 %v1003, %v997
    %v1100 = vpack.c.b16 %v1004, %v998
    %v1101 = vpack.c.b16 %v1005, %v999
    %v1102 = vpack.c.b16 %v1006, %v1000
    %v1103 = vpack.c.b16 %v1007, %v1001
    %v1104 = vpack.c.b16 %v1008, %v1002
    %1201 = vmatpush.bf16.msra.mxu0 %v1051
    %1202 = vmatpush.bf16.msra.mxu0 %v1045
    %1203 = vmatpush.bf16.msra.mxu0 %v1039
    %1204 = vmatpush.bf16.msra.mxu0 %v1033
    %1205 = vmatpush.bf16.msra.mxu0 %v1027
    %1206 = vmatpush.bf16.msra.mxu0 %v1021
    %1207 = vmatpush.bf16.msra.mxu0 %v1015
    %1208 = vmatpush.bf16.msra.mxu0 %v1009
    %1209 = vmatmul.bf16.gmra.mxu0 %v609
    %v1210 = vpop.f32.mrf.mxu0
    %v1211 = vadd.f32 %v709, %v1210
    %v1212 = vpop.f32.mrf.mxu0
    %1213 = vdwg.mxu0
    %1214 = vmatpush.bf16.msra.mxu0 %v1099
    %1215 = vmatpush.bf16.msra.mxu0 %v1093
    %1216 = vmatpush.bf16.msra.mxu0 %v1087
    %1217 = vmatpush.bf16.msra.mxu0 %v1081
    %1218 = vmatpush.bf16.msra.mxu0 %v1075
    %1219 = vmatpush.bf16.msra.mxu0 %v1069
    %1220 = vmatpush.bf16.msra.mxu0 %v1063
    %1221 = vmatpush.bf16.msra.mxu0 %v1057
    %1222 = vmatmul.bf16.gmra.mxu0 %v610
    %v1223 = vpop.f32.mrf.mxu0
    %v1224 = vadd.f32 %v1211, %v1223
    %v1225 = vpop.f32.mrf.mxu0
    %1226 = vdwg.mxu0
    %1227 = vmatpush.bf16.msra.mxu0 %v1052
    %1228 = vmatpush.bf16.msra.mxu0 %v1046
    %1229 = vmatpush.bf16.msra.mxu0 %v1040
    %1230 = vmatpush.bf16.msra.mxu0 %v1034
    %1231 = vmatpush.bf16.msra.mxu0 %v1028
    %1232 = vmatpush.bf16.msra.mxu0 %v1022
    %1233 = vmatpush.bf16.msra.mxu0 %v1016
    %1234 = vmatpush.bf16.msra.mxu0 %v1010
    %1235 = vmatmul.bf16.gmra.mxu0 %v609
    %v1236 = vpop.f32.mrf.mxu0
    %v1237 = vadd.f32 %v710, %v1236
    %v1238 = vpop.f32.mrf.mxu0
    %1239 = vdwg.mxu0
    %1240 = vmatpush.bf16.msra.mxu0 %v1100
    %1241 = vmatpush.bf16.msra.mxu0 %v1094
    %1242 = vmatpush.bf16.msra.mxu0 %v1088
    %1243 = vmatpush.bf16.msra.mxu0 %v1082
    %1244 = vmatpush.bf16.msra.mxu0 %v1076
    %1245 = vmatpush.bf16.msra.mxu0 %v1070
    %1246 = vmatpush.bf16.msra.mxu0 %v1064
    %1247 = vmatpush.bf16.msra.mxu0 %v1058
    %1248 = vmatmul.bf16.gmra.mxu0 %v610
    %v1249 = vpop.f32.mrf.mxu0
    %v1250 = vadd.f32 %v1237, %v1249
    %v1251 = vpop.f32.mrf.mxu0
    %1252 = vdwg.mxu0
    %1253 = vmatpush.bf16.msra.mxu0 %v1053
    %1254 = vmatpush.bf16.msra.mxu0 %v1047
    %1255 = vmatpush.bf16.msra.mxu0 %v1041
    %1256 = vmatpush.bf16.msra.mxu0 %v1035
    %1257 = vmatpush.bf16.msra.mxu0 %v1029
    %1258 = vmatpush.bf16.msra.mxu0 %v1023
    %1259 = vmatpush.bf16.msra.mxu0 %v1017
    %1260 = vmatpush.bf16.msra.mxu0 %v1011
    %1261 = vmatmul.bf16.gmra.mxu0 %v609
    %v1262 = vpop.f32.mrf.mxu0
    %v1263 = vadd.f32 %v711, %v1262
    %v1264 = vpop.f32.mrf.mxu0
    %1265 = vdwg.mxu0
    %1266 = vmatpush.bf16.msra.mxu0 %v1101
    %1267 = vmatpush.bf16.msra.mxu0 %v1095
    %1268 = vmatpush.bf16.msra.mxu0 %v1089
    %1269 = vmatpush.bf16.msra.mxu0 %v1083
    %1270 = vmatpush.bf16.msra.mxu0 %v1077
    %1271 = vmatpush.bf16.msra.mxu0 %v1071
    %1272 = vmatpush.bf16.msra.mxu0 %v1065
    %1273 = vmatpush.bf16.msra.mxu0 %v1059
    %1274 = vmatmul.bf16.gmra.mxu0 %v610
    %v1275 = vpop.f32.mrf.mxu0
    %v1276 = vadd.f32 %v1263, %v1275
    %v1277 = vpop.f32.mrf.mxu0
    %1278 = vdwg.mxu0
    %1279 = vmatpush.bf16.msra.mxu0 %v1054
    %1280 = vmatpush.bf16.msra.mxu0 %v1048
    %1281 = vmatpush.bf16.msra.mxu0 %v1042
    %1282 = vmatpush.bf16.msra.mxu0 %v1036
    %1283 = vmatpush.bf16.msra.mxu0 %v1030
    %1284 = vmatpush.bf16.msra.mxu0 %v1024
    %1285 = vmatpush.bf16.msra.mxu0 %v1018
    %1286 = vmatpush.bf16.msra.mxu0 %v1012
    %1287 = vmatmul.bf16.gmra.mxu0 %v609
    %v1288 = vpop.f32.mrf.mxu0
    %v1289 = vadd.f32 %v712, %v1288
    %v1290 = vpop.f32.mrf.mxu0
    %1291 = vdwg.mxu0
    %1292 = vmatpush.bf16.msra.mxu0 %v1102
    %1293 = vmatpush.bf16.msra.mxu0 %v1096
    %1294 = vmatpush.bf16.msra.mxu0 %v1090
    %1295 = vmatpush.bf16.msra.mxu0 %v1084
    %1296 = vmatpush.bf16.msra.mxu0 %v1078
    %1297 = vmatpush.bf16.msra.mxu0 %v1072
    %1298 = vmatpush.bf16.msra.mxu0 %v1066
    %1299 = vmatpush.bf16.msra.mxu0 %v1060
    %1300 = vmatmul.bf16.gmra.mxu0 %v610
    %v1301 = vpop.f32.mrf.mxu0
    %v1302 = vadd.f32 %v1289, %v1301
    %v1303 = vpop.f32.mrf.mxu0
    %1304 = vdwg.mxu0
    %1305 = vmatpush.bf16.msra.mxu0 %v1055
    %1306 = vmatpush.bf16.msra.mxu0 %v1049
    %1307 = vmatpush.bf16.msra.mxu0 %v1043
    %1308 = vmatpush.bf16.msra.mxu0 %v1037
    %1309 = vmatpush.bf16.msra.mxu0 %v1031
    %1310 = vmatpush.bf16.msra.mxu0 %v1025
    %1311 = vmatpush.bf16.msra.mxu0 %v1019
    %1312 = vmatpush.bf16.msra.mxu0 %v1013
    %1313 = vmatmul.bf16.gmra.mxu0 %v609
    %v1314 = vpop.f32.mrf.mxu0
    %v1315 = vadd.f32 %v713, %v1314
    %v1316 = vpop.f32.mrf.mxu0
    %1317 = vdwg.mxu0
    %1318 = vmatpush.bf16.msra.mxu0 %v1103
    %1319 = vmatpush.bf16.msra.mxu0 %v1097
    %1320 = vmatpush.bf16.msra.mxu0 %v1091
    %1321 = vmatpush.bf16.msra.mxu0 %v1085
    %1322 = vmatpush.bf16.msra.mxu0 %v1079
    %1323 = vmatpush.bf16.msra.mxu0 %v1073
    %1324 = vmatpush.bf16.msra.mxu0 %v1067
    %1325 = vmatpush.bf16.msra.mxu0 %v1061
    %1326 = vmatmul.bf16.gmra.mxu0 %v610
    %v1327 = vpop.f32.mrf.mxu0
    %v1328 = vadd.f32 %v1315, %v1327
    %v1329 = vpop.f32.mrf.mxu0
    %1330 = vdwg.mxu0
    %1331 = vmatpush.bf16.msra.mxu0 %v1056
    %1332 = vmatpush.bf16.msra.mxu0 %v1050
    %1333 = vmatpush.bf16.msra.mxu0 %v1044
    %1334 = vmatpush.bf16.msra.mxu0 %v1038
    %1335 = vmatpush.bf16.msra.mxu0 %v1032
    %1336 = vmatpush.bf16.msra.mxu0 %v1026
    %1337 = vmatpush.bf16.msra.mxu0 %v1020
    %1338 = vmatpush.bf16.msra.mxu0 %v1014
    %1339 = vmatmul.bf16.gmra.mxu0 %v609
    %v1340 = vpop.f32.mrf.mxu0
    %v1341 = vadd.f32 %v714, %v1340
    %v1342 = vpop.f32.mrf.mxu0
    %1343 = vdwg.mxu0
    %1344 = vmatpush.bf16.msra.mxu0 %v1104
    %1345 = vmatpush.bf16.msra.mxu0 %v1098
    %1346 = vmatpush.bf16.msra.mxu0 %v1092
    %1347 = vmatpush.bf16.msra.mxu0 %v1086
    %1348 = vmatpush.bf16.msra.mxu0 %v1080
    %1349 = vmatpush.bf16.msra.mxu0 %v1074
    %1350 = vmatpush.bf16.msra.mxu0 %v1068
    %1351 = vmatpush.bf16.msra.mxu0 %v1062
    %1352 = vmatmul.bf16.gmra.mxu0 %v610
    %v1353 = vpop.f32.mrf.mxu0
    %v1354 = vadd.f32 %v1341, %v1353
    %v1355 = vpop.f32.mrf.mxu0
    %1356 = vdwg.mxu0
    %v1357 = vxor.u32 %v1224, 2147483648
    %v1358 = vxor.u32 %v1250, 2147483648
    %v1359 = vmul.f32 %v1357, 1.442695
    %v1360 = vpow.pop %v1359
    %v1361 = vmul.f32 %v1358, 1.442695
    %v1362 = vpow.pop %v1361
    %v1363 = vadd.f32 %v1360, 1.0
    %v1364 = vadd.f32 %v1362, 1.0
    %v1365 = vrcp.pop %v1363
    %v1366 = vmul.f32 %v1363, %v1365
    %v1367 = vsub.f32 1.0, %v1366
    %v1368 = vmul.f32 %v1365, %v1367
    %v1369 = vadd.f32 %v1365, %v1368
    %vm1370 = vweird.f32 %v1363
    %vm1371 = vweird.f32 %v1365
    %vm1372 = vmor %vm1370, %vm1371
    %v1373 = vsel %vm1372, %v1365, %v1369
    %v1374 = vand.u32 2147483647, %v1363
    %vm1375 = vcmp.eq.f32.partialorder %v1374, 8.507059e+37
    %v1376 = vand.u32 %v1363, 2147483648
    %v1377 = vor.u32 1.1754944e-38, %v1376
    %v1378 = vsel %vm1375, %v1377, %v1373
    %v1379 = vmul.f32 1.0, %v1378
    %v1380 = vrcp.pop %v1364
    %v1381 = vmul.f32 %v1364, %v1380
    %v1382 = vsub.f32 1.0, %v1381
    %v1383 = vmul.f32 %v1380, %v1382
    %v1384 = vadd.f32 %v1380, %v1383
    %vm1385 = vweird.f32 %v1364
    %vm1386 = vweird.f32 %v1380
    %vm1387 = vmor %vm1385, %vm1386
    %v1388 = vsel %vm1387, %v1380, %v1384
    %v1389 = vand.u32 2147483647, %v1364
    %vm1390 = vcmp.eq.f32.partialorder %v1389, 8.507059e+37
    %v1391 = vand.u32 %v1364, 2147483648
    %v1392 = vor.u32 1.1754944e-38, %v1391
    %v1393 = vsel %vm1390, %v1392, %v1388
    %v1394 = vmul.f32 1.0, %v1393
    %v1395 = vtanh.pop %v1276
    %v1396 = vtanh.pop %v1302
    %v1397 = vxor.u32 %v1328, 2147483648
    %v1398 = vxor.u32 %v1354, 2147483648
    %v1399 = vmul.f32 %v1397, 1.442695
    %v1400 = vpow.pop %v1399
    %v1401 = vmul.f32 %v1398, 1.442695
    %v1402 = vpow.pop %v1401
    %v1403 = vadd.f32 %v1400, 1.0
    %v1404 = vadd.f32 %v1402, 1.0
    %v1405 = vrcp.pop %v1403
    %v1406 = vmul.f32 %v1403, %v1405
    %v1407 = vsub.f32 1.0, %v1406
    %v1408 = vmul.f32 %v1405, %v1407
    %v1409 = vadd.f32 %v1405, %v1408
    %vm1410 = vweird.f32 %v1403
    %vm1411 = vweird.f32 %v1405
    %vm1412 = vmor %vm1410, %vm1411
    %v1413 = vsel %vm1412, %v1405, %v1409
    %v1414 = vand.u32 2147483647, %v1403
    %vm1415 = vcmp.eq.f32.partialorder %v1414, 8.507059e+37
    %v1416 = vand.u32 %v1403, 2147483648
    %v1417 = vor.u32 1.1754944e-38, %v1416
    %v1418 = vsel %vm1415, %v1417, %v1413
    %v1419 = vmul.f32 1.0, %v1418
    %v1420 = vrcp.pop %v1404
    %v1421 = vmul.f32 %v1404, %v1420
    %v1422 = vsub.f32 1.0, %v1421
    %v1423 = vmul.f32 %v1420, %v1422
    %v1424 = vadd.f32 %v1420, %v1423
    %vm1425 = vweird.f32 %v1404
    %vm1426 = vweird.f32 %v1420
    %vm1427 = vmor %vm1425, %vm1426
    %v1428 = vsel %vm1427, %v1420, %v1424
    %v1429 = vand.u32 2147483647, %v1404
    %vm1430 = vcmp.eq.f32.partialorder %v1429, 8.507059e+37
    %v1431 = vand.u32 %v1404, 2147483648
    %v1432 = vor.u32 1.1754944e-38, %v1431
    %v1433 = vsel %vm1430, %v1432, %v1428
    %v1434 = vmul.f32 1.0, %v1433
    %v1435 = vmul.f32 %v1379, %v1395
    %v1436 = vmul.f32 %v1394, %v1396
    %v1437 = vtanh.pop %v1435
    %v1438 = vtanh.pop %v1436
    %v1439 = vmul.f32 %v1419, %v1437
    %v1440 = vmul.f32 %v1434, %v1438
    %v1441 = vpack.c.bf16 %v1439, %v1439
    %v1442 = vpack.c.bf16 %v1440, %v1440
    %v1443 = vld [vmem:[#allocation12] sm:$0xff]
    %v1444 = vld [vmem:[#allocation12 + $0x8] sm:$0xf]
    %v1445 = vld [vmem:[#allocation12 + $0xc] sm:$0xff]
    %v1446 = vld [vmem:[#allocation12 + $0x14] sm:$0xf]
    %v1447 = vld [vmem:[#allocation12 + $0x18] sm:$0xff]
    %v1448 = vld [vmem:[#allocation12 + $0x20] sm:$0xf]
    %v1449 = vld [vmem:[#allocation12 + $0x24] sm:$0xff]
    %v1450 = vld [vmem:[#allocation12 + $0x2c] sm:$0xf]
    %v1451 = vld [vmem:[#allocation12 + $0x30] sm:$0xff]
    %v1452 = vld [vmem:[#allocation12 + $0x38] sm:$0xf]
    %v1453 = vld [vmem:[#allocation12 + $0x3c] sm:$0xff]
    %v1454 = vld [vmem:[#allocation12 + $0x44] sm:$0xf]
    %v1455 = vld [vmem:[#allocation12 + $0x48] sm:$0xff]
    %v1456 = vld [vmem:[#allocation12 + $0x50] sm:$0xf]
    %v1457 = vld [vmem:[#allocation12 + $0x54] sm:$0xff]
    %v1458 = vld [vmem:[#allocation12 + $0x5c] sm:$0xf]
    %v1459 = vld [vmem:[#allocation12 + $0x60] sm:$0xff]
    %v1460 = vld [vmem:[#allocation12 + $0x68] sm:$0xf]
    %v1461 = vld [vmem:[#allocation12 + $0x6c] sm:$0xff]
    %v1462 = vld [vmem:[#allocation12 + $0x74] sm:$0xf]
    %v1463 = vld [vmem:[#allocation12 + $0x78] sm:$0xff]
    %v1464 = vld [vmem:[#allocation12 + $0x80] sm:$0xf]
    %v1465 = vld [vmem:[#allocation12 + $0x84] sm:$0xff]
    %v1466 = vld [vmem:[#allocation12 + $0x8c] sm:$0xf]
    %v1467 = vld [vmem:[#allocation12 + $0x90] sm:$0xff]
    %v1468 = vld [vmem:[#allocation12 + $0x98] sm:$0xf]
    %v1469 = vld [vmem:[#allocation12 + $0x9c] sm:$0xff]
    %v1470 = vld [vmem:[#allocation12 + $0xa4] sm:$0xf]
    %v1471 = vld [vmem:[#allocation12 + $0xa8] sm:$0xff]
    %v1472 = vld [vmem:[#allocation12 + $0xb0] sm:$0xf]
    %v1473 = vld [vmem:[#allocation12 + $0xb4] sm:$0xff]
    %v1474 = vld [vmem:[#allocation12 + $0xbc] sm:$0xf]
    %v1475 = vld [vmem:[#allocation12 + $0xc0] sm:$0xff]
    %v1476 = vld [vmem:[#allocation12 + $0xc8] sm:$0xf]
    %v1477 = vld [vmem:[#allocation12 + $0xcc] sm:$0xff]
    %v1478 = vld [vmem:[#allocation12 + $0xd4] sm:$0xf]
    %v1479 = vld [vmem:[#allocation12 + $0xd8] sm:$0xff]
    %v1480 = vld [vmem:[#allocation12 + $0xe0] sm:$0xf]
    %v1481 = vld [vmem:[#allocation12 + $0xe4] sm:$0xff]
    %v1482 = vld [vmem:[#allocation12 + $0xec] sm:$0xf]
    %v1483 = vld [vmem:[#allocation12 + $0xf0] sm:$0xff]
    %v1484 = vld [vmem:[#allocation12 + $0xf8] sm:$0xf]
    %v1485 = vld [vmem:[#allocation12 + $0xfc] sm:$0xff]
    %v1486 = vld [vmem:[#allocation12 + $0x104] sm:$0xf]
    %v1487 = vld [vmem:[#allocation12 + $0x108] sm:$0xff]
    %v1488 = vld [vmem:[#allocation12 + $0x110] sm:$0xf]
    %v1489 = vld [vmem:[#allocation12 + $0x114] sm:$0xff]
    %v1490 = vld [vmem:[#allocation12 + $0x11c] sm:$0xf]
    %v1491 = vld [vmem:[#allocation12 + $0x120] sm:$0xff]
    %v1492 = vld [vmem:[#allocation12 + $0x128] sm:$0xf]
    %v1493 = vld [vmem:[#allocation12 + $0x12c] sm:$0xff]
    %v1494 = vld [vmem:[#allocation12 + $0x134] sm:$0xf]
    %v1495 = vld [vmem:[#allocation12 + $0x138] sm:$0xff]
    %v1496 = vld [vmem:[#allocation12 + $0x140] sm:$0xf]
    %v1497 = vld [vmem:[#allocation12 + $0x144] sm:$0xff]
    %v1498 = vld [vmem:[#allocation12 + $0x14c] sm:$0xf]
    %v1499 = vld [vmem:[#allocation12 + $0x150] sm:$0xff]
    %v1500 = vld [vmem:[#allocation12 + $0x158] sm:$0xf]
    %v1501 = vld [vmem:[#allocation12 + $0x15c] sm:$0xff]
    %v1502 = vld [vmem:[#allocation12 + $0x164] sm:$0xf]
    %v1503 = vld [vmem:[#allocation12 + $0x168] sm:$0xff]
    %v1504 = vld [vmem:[#allocation12 + $0x170] sm:$0xf]
    %v1505 = vld [vmem:[#allocation12 + $0x174] sm:$0xff]
    %v1506 = vld [vmem:[#allocation12 + $0x17c] sm:$0xf]
    %v1507 = vld [vmem:[%s6] sm:$0x7]
    %v1509 = vperm.slane %v1507, 0
    %v1510 = vperm.slane %v1507, 1
    %v1511 = vperm.slane %v1507, 2
    %v1579 = vunpack.c.l.b16 %v1443
    %v1580 = vunpack.c.h.b16 %v1443
    %v1581 = vunpack.c.l.b16 %v1444
    %v1582 = vunpack.c.l.b16 %v1445
    %v1583 = vunpack.c.h.b16 %v1445
    %v1584 = vunpack.c.l.b16 %v1446
    %v1585 = vunpack.c.l.b16 %v1447
    %v1586 = vunpack.c.h.b16 %v1447
    %v1587 = vunpack.c.l.b16 %v1448
    %v1588 = vunpack.c.l.b16 %v1449
    %v1589 = vunpack.c.h.b16 %v1449
    %v1590 = vunpack.c.l.b16 %v1450
    %v1591 = vunpack.c.l.b16 %v1451
    %v1592 = vunpack.c.h.b16 %v1451
    %v1593 = vunpack.c.l.b16 %v1452
    %v1594 = vunpack.c.l.b16 %v1453
    %v1595 = vunpack.c.h.b16 %v1453
    %v1596 = vunpack.c.l.b16 %v1454
    %v1597 = vunpack.c.l.b16 %v1455
    %v1598 = vunpack.c.h.b16 %v1455
    %v1599 = vunpack.c.l.b16 %v1456
    %v1600 = vunpack.c.l.b16 %v1457
    %v1601 = vunpack.c.h.b16 %v1457
    %v1602 = vunpack.c.l.b16 %v1458
    %v1603 = vunpack.c.l.b16 %v1459
    %v1604 = vunpack.c.h.b16 %v1459
    %v1605 = vunpack.c.l.b16 %v1460
    %v1606 = vunpack.c.l.b16 %v1461
    %v1607 = vunpack.c.h.b16 %v1461
    %v1608 = vunpack.c.l.b16 %v1462
    %v1609 = vunpack.c.l.b16 %v1463
    %v1610 = vunpack.c.h.b16 %v1463
    %v1611 = vunpack.c.l.b16 %v1464
    %v1612 = vunpack.c.l.b16 %v1465
    %v1613 = vunpack.c.h.b16 %v1465
    %v1614 = vunpack.c.l.b16 %v1466
    %v1615 = vunpack.c.l.b16 %v1467
    %v1616 = vunpack.c.h.b16 %v1467
    %v1617 = vunpack.c.l.b16 %v1468
    %v1618 = vunpack.c.l.b16 %v1469
    %v1619 = vunpack.c.h.b16 %v1469
    %v1620 = vunpack.c.l.b16 %v1470
    %v1621 = vunpack.c.l.b16 %v1471
    %v1622 = vunpack.c.h.b16 %v1471
    %v1623 = vunpack.c.l.b16 %v1472
    %v1624 = vunpack.c.l.b16 %v1473
    %v1625 = vunpack.c.h.b16 %v1473
    %v1626 = vunpack.c.l.b16 %v1474
    %v1627 = vunpack.c.l.b16 %v1475
    %v1628 = vunpack.c.h.b16 %v1475
    %v1629 = vunpack.c.l.b16 %v1476
    %v1630 = vunpack.c.l.b16 %v1477
    %v1631 = vunpack.c.h.b16 %v1477
    %v1632 = vunpack.c.l.b16 %v1478
    %v1633 = vunpack.c.l.b16 %v1479
    %v1634 = vunpack.c.h.b16 %v1479
    %v1635 = vunpack.c.l.b16 %v1480
    %v1636 = vunpack.c.l.b16 %v1481
    %v1637 = vunpack.c.h.b16 %v1481
    %v1638 = vunpack.c.l.b16 %v1482
    %v1639 = vunpack.c.l.b16 %v1483
    %v1640 = vunpack.c.h.b16 %v1483
    %v1641 = vunpack.c.l.b16 %v1484
    %v1642 = vunpack.c.l.b16 %v1485
    %v1643 = vunpack.c.h.b16 %v1485
    %v1644 = vunpack.c.l.b16 %v1486
    %v1645 = vunpack.c.l.b16 %v1487
    %v1646 = vunpack.c.h.b16 %v1487
    %v1647 = vunpack.c.l.b16 %v1488
    %v1648 = vunpack.c.l.b16 %v1489
    %v1649 = vunpack.c.h.b16 %v1489
    %v1650 = vunpack.c.l.b16 %v1490
    %v1651 = vunpack.c.l.b16 %v1491
    %v1652 = vunpack.c.h.b16 %v1491
    %v1653 = vunpack.c.l.b16 %v1492
    %v1654 = vunpack.c.l.b16 %v1493
    %v1655 = vunpack.c.h.b16 %v1493
    %v1656 = vunpack.c.l.b16 %v1494
    %v1657 = vunpack.c.l.b16 %v1495
    %v1658 = vunpack.c.h.b16 %v1495
    %v1659 = vunpack.c.l.b16 %v1496
    %v1660 = vunpack.c.l.b16 %v1497
    %v1661 = vunpack.c.h.b16 %v1497
    %v1662 = vunpack.c.l.b16 %v1498
    %v1663 = vunpack.c.l.b16 %v1499
    %v1664 = vunpack.c.h.b16 %v1499
    %v1665 = vunpack.c.l.b16 %v1500
    %v1666 = vunpack.c.l.b16 %v1501
    %v1667 = vunpack.c.h.b16 %v1501
    %v1668 = vunpack.c.l.b16 %v1502
    %v1669 = vunpack.c.l.b16 %v1503
    %v1670 = vunpack.c.h.b16 %v1503
    %v1671 = vunpack.c.l.b16 %v1504
    %v1672 = vunpack.c.l.b16 %v1505
    %v1673 = vunpack.c.h.b16 %v1505
    %v1674 = vunpack.c.l.b16 %v1506
    %v1675 = vpack.c.b16 %v1582, %v1579
    %v1676 = vpack.c.b16 %v1583, %v1580
    %v1677 = vpack.c.b16 %v1584, %v1581
    %v1678 = vpack.c.b16 %v1588, %v1585
    %v1679 = vpack.c.b16 %v1589, %v1586
    %v1680 = vpack.c.b16 %v1590, %v1587
    %v1681 = vpack.c.b16 %v1594, %v1591
    %v1682 = vpack.c.b16 %v1595, %v1592
    %v1683 = vpack.c.b16 %v1596, %v1593
    %v1684 = vpack.c.b16 %v1600, %v1597
    %v1685 = vpack.c.b16 %v1601, %v1598
    %v1686 = vpack.c.b16 %v1602, %v1599
    %v1687 = vpack.c.b16 %v1606, %v1603
    %v1688 = vpack.c.b16 %v1607, %v1604
    %v1689 = vpack.c.b16 %v1608, %v1605
    %v1690 = vpack.c.b16 %v1612, %v1609
    %v1691 = vpack.c.b16 %v1613, %v1610
    %v1692 = vpack.c.b16 %v1614, %v1611
    %v1693 = vpack.c.b16 %v1618, %v1615
    %v1694 = vpack.c.b16 %v1619, %v1616
    %v1695 = vpack.c.b16 %v1620, %v1617
    %v1696 = vpack.c.b16 %v1624, %v1621
    %v1697 = vpack.c.b16 %v1625, %v1622
    %v1698 = vpack.c.b16 %v1626, %v1623
    %v1699 = vpack.c.b16 %v1630, %v1627
    %v1700 = vpack.c.b16 %v1631, %v1628
    %v1701 = vpack.c.b16 %v1632, %v1629
    %v1702 = vpack.c.b16 %v1636, %v1633
    %v1703 = vpack.c.b16 %v1637, %v1634
    %v1704 = vpack.c.b16 %v1638, %v1635
    %v1705 = vpack.c.b16 %v1642, %v1639
    %v1706 = vpack.c.b16 %v1643, %v1640
    %v1707 = vpack.c.b16 %v1644, %v1641
    %v1708 = vpack.c.b16 %v1648, %v1645
    %v1709 = vpack.c.b16 %v1649, %v1646
    %v1710 = vpack.c.b16 %v1650, %v1647
    %v1711 = vpack.c.b16 %v1654, %v1651
    %v1712 = vpack.c.b16 %v1655, %v1652
    %v1713 = vpack.c.b16 %v1656, %v1653
    %v1714 = vpack.c.b16 %v1660, %v1657
    %v1715 = vpack.c.b16 %v1661, %v1658
    %v1716 = vpack.c.b16 %v1662, %v1659
    %v1717 = vpack.c.b16 %v1666, %v1663
    %v1718 = vpack.c.b16 %v1667, %v1664
    %v1719 = vpack.c.b16 %v1668, %v1665
    %v1720 = vpack.c.b16 %v1672, %v1669
    %v1721 = vpack.c.b16 %v1673, %v1670
    %v1722 = vpack.c.b16 %v1674, %v1671
    %1771 = vmatpush.bf16.msra.mxu0 %v1696
    %1772 = vmatpush.bf16.msra.mxu0 %v1693
    %1773 = vmatpush.bf16.msra.mxu0 %v1690
    %1774 = vmatpush.bf16.msra.mxu0 %v1687
    %1775 = vmatpush.bf16.msra.mxu0 %v1684
    %1776 = vmatpush.bf16.msra.mxu0 %v1681
    %1777 = vmatpush.bf16.msra.mxu0 %v1678
    %1778 = vmatpush.bf16.msra.mxu0 %v1675
    %1779 = vmatmul.bf16.gmra.mxu0 %v1441
    %v1780 = vpop.f32.mrf.mxu0
    %v1781 = vadd.f32 %v1509, %v1780
    %v1782 = vpop.f32.mrf.mxu0
    %1783 = vdwg.mxu0
    %1784 = vmatpush.bf16.msra.mxu0 %v1720
    %1785 = vmatpush.bf16.msra.mxu0 %v1717
    %1786 = vmatpush.bf16.msra.mxu0 %v1714
    %1787 = vmatpush.bf16.msra.mxu0 %v1711
    %1788 = vmatpush.bf16.msra.mxu0 %v1708
    %1789 = vmatpush.bf16.msra.mxu0 %v1705
    %1790 = vmatpush.bf16.msra.mxu0 %v1702
    %1791 = vmatpush.bf16.msra.mxu0 %v1699
    %1792 = vmatmul.bf16.gmra.mxu0 %v1442
    %v1793 = vpop.f32.mrf.mxu0
    %v1794 = vadd.f32 %v1781, %v1793
    %v1795 = vpop.f32.mrf.mxu0
    %1796 = vdwg.mxu0
    %1797 = vmatpush.bf16.msra.mxu0 %v1697
    %1798 = vmatpush.bf16.msra.mxu0 %v1694
    %1799 = vmatpush.bf16.msra.mxu0 %v1691
    %1800 = vmatpush.bf16.msra.mxu0 %v1688
    %1801 = vmatpush.bf16.msra.mxu0 %v1685
    %1802 = vmatpush.bf16.msra.mxu0 %v1682
    %1803 = vmatpush.bf16.msra.mxu0 %v1679
    %1804 = vmatpush.bf16.msra.mxu0 %v1676
    %1805 = vmatmul.bf16.gmra.mxu0 %v1441
    %v1806 = vpop.f32.mrf.mxu0
    %v1807 = vadd.f32 %v1510, %v1806
    %v1808 = vpop.f32.mrf.mxu0
    %1809 = vdwg.mxu0
    %1810 = vmatpush.bf16.msra.mxu0 %v1721
    %1811 = vmatpush.bf16.msra.mxu0 %v1718
    %1812 = vmatpush.bf16.msra.mxu0 %v1715
    %1813 = vmatpush.bf16.msra.mxu0 %v1712
    %1814 = vmatpush.bf16.msra.mxu0 %v1709
    %1815 = vmatpush.bf16.msra.mxu0 %v1706
    %1816 = vmatpush.bf16.msra.mxu0 %v1703
    %1817 = vmatpush.bf16.msra.mxu0 %v1700
    %1818 = vmatmul.bf16.gmra.mxu0 %v1442
    %v1819 = vpop.f32.mrf.mxu0
    %v1820 = vadd.f32 %v1807, %v1819
    %v1821 = vpop.f32.mrf.mxu0
    %1822 = vdwg.mxu0
    %1823 = vmatpush.bf16.msra.mxu0 %v1698
    %1824 = vmatpush.bf16.msra.mxu0 %v1695
    %1825 = vmatpush.bf16.msra.mxu0 %v1692
    %1826 = vmatpush.bf16.msra.mxu0 %v1689
    %1827 = vmatpush.bf16.msra.mxu0 %v1686
    %1828 = vmatpush.bf16.msra.mxu0 %v1683
    %1829 = vmatpush.bf16.msra.mxu0 %v1680
    %1830 = vmatpush.bf16.msra.mxu0 %v1677
    %1831 = vmatmul.bf16.gmra.mxu0 %v1441
    %v1832 = vpop.f32.mrf.mxu0
    %v1833 = vadd.f32 %v1511, %v1832
    %v1834 = vpop.f32.mrf.mxu0
    %1835 = vdwg.mxu0
    %1836 = vmatpush.bf16.msra.mxu0 %v1722
    %1837 = vmatpush.bf16.msra.mxu0 %v1719
    %1838 = vmatpush.bf16.msra.mxu0 %v1716
    %1839 = vmatpush.bf16.msra.mxu0 %v1713
    %1840 = vmatpush.bf16.msra.mxu0 %v1710
    %1841 = vmatpush.bf16.msra.mxu0 %v1707
    %1842 = vmatpush.bf16.msra.mxu0 %v1704
    %1843 = vmatpush.bf16.msra.mxu0 %v1701
    %1844 = vmatmul.bf16.gmra.mxu0 %v1442
    %v1845 = vpop.f32.mrf.mxu0
    %v1846 = vadd.f32 %v1833, %v1845
    %v1847 = vpop.f32.mrf.mxu0
    %1848 = vdwg.mxu0
    %v1849 = vmax.f32 %v1794, 0.0
    %v1850 = vmax.f32 %v1820, 0.0
    %v1851 = vmax.f32 %v1846, 0.0
    %v1852 = vld [vmem:[%s7] sm:$0x1]
    %v1854 = vperm.slane %v1852, 0
    %v1856 = vmul.f32 %v1849, %v1854
    %1857 = vadd.xlane.f32.xlu0 %v1856
    %v1858 = vpop.xlane.xlu0 %1857
    %v1859 = vld [vmem:[#allocation2] sm:$0x1]
    %v1861 = vperm.slane %v1859, 0
    %v1863 = vadd.f32 %v1858, %v1861
    %v1864 = vxor.u32 %v1863, 2147483648
    %v1865 = vmul.f32 %v1864, 1.442695
    %v1866 = vpow.pop %v1865
    %v1867 = vadd.f32 %v1866, 1.0
    %v1868 = vrcp.pop %v1867
    %v1869 = vmul.f32 %v1867, %v1868
    %v1870 = vsub.f32 1.0, %v1869
    %v1871 = vmul.f32 %v1868, %v1870
    %v1872 = vadd.f32 %v1868, %v1871
    %vm1873 = vweird.f32 %v1867
    %vm1874 = vweird.f32 %v1868
    %vm1875 = vmor %vm1873, %vm1874
    %v1876 = vsel %vm1875, %v1868, %v1872
    %v1877 = vand.u32 2147483647, %v1867
    %vm1878 = vcmp.eq.f32.partialorder %v1877, 8.507059e+37
    %v1879 = vand.u32 %v1867, 2147483648
    %v1880 = vor.u32 1.1754944e-38, %v1879
    %v1881 = vsel %vm1878, %v1880, %v1876
    %v1882 = vmul.f32 1.0, %v1881
    %v1883 = vxor.u32 %v1882, 2147483648
    %v1884 = vmul.f32 %v1883, 1.442695
    %v1885 = vpow.pop %v1884
    %v1886 = vadd.f32 %v1885, 1.0
    %v1887 = vrcp.pop %v1886
    %v1888 = vmul.f32 %v1886, %v1887
    %v1889 = vsub.f32 1.0, %v1888
    %v1890 = vmul.f32 %v1887, %v1889
    %v1891 = vadd.f32 %v1887, %v1890
    %vm1892 = vweird.f32 %v1886
    %vm1893 = vweird.f32 %v1887
    %vm1894 = vmor %vm1892, %vm1893
    %v1895 = vsel %vm1894, %v1887, %v1891
    %v1896 = vand.u32 2147483647, %v1886
    %vm1897 = vcmp.eq.f32.partialorder %v1896, 8.507059e+37
    %v1898 = vand.u32 %v1886, 2147483648
    %v1899 = vor.u32 1.1754944e-38, %v1898
    %v1900 = vsel %vm1897, %v1899, %v1895
    %v1901 = vmul.f32 1.0, %v1900
    %v1902 = vpack.c.bf16 %v1850, %v1850
    %v1903 = vpack.c.bf16 %v1851, %v1851
    %v1904 = vld [vmem:[#allocation14] sm:$0xf]
    %v1905 = vld [vmem:[#allocation14 + $0x4] sm:$0xf]
    %v1906 = vld [vmem:[#allocation14 + $0x8] sm:$0xf]
    %v1907 = vld [vmem:[#allocation14 + $0xc] sm:$0xf]
    %v1908 = vld [vmem:[#allocation14 + $0x10] sm:$0xf]
    %v1909 = vld [vmem:[#allocation14 + $0x14] sm:$0xf]
    %v1910 = vld [vmem:[#allocation14 + $0x18] sm:$0xf]
    %v1911 = vld [vmem:[#allocation14 + $0x1c] sm:$0xf]
    %v1912 = vld [vmem:[#allocation14 + $0x20] sm:$0xf]
    %v1913 = vld [vmem:[#allocation14 + $0x24] sm:$0xf]
    %v1914 = vld [vmem:[#allocation14 + $0x28] sm:$0xf]
    %v1915 = vld [vmem:[#allocation14 + $0x2c] sm:$0xf]
    %v1916 = vld [vmem:[#allocation14 + $0x30] sm:$0xf]
    %v1917 = vld [vmem:[#allocation14 + $0x34] sm:$0xf]
    %v1918 = vld [vmem:[#allocation14 + $0x38] sm:$0xf]
    %v1919 = vld [vmem:[#allocation14 + $0x3c] sm:$0xf]
    %v1920 = vld [vmem:[#allocation14 + $0x40] sm:$0xf]
    %v1921 = vld [vmem:[#allocation14 + $0x44] sm:$0xf]
    %v1922 = vld [vmem:[#allocation14 + $0x48] sm:$0xf]
    %v1923 = vld [vmem:[#allocation14 + $0x4c] sm:$0xf]
    %v1924 = vld [vmem:[#allocation14 + $0x50] sm:$0xf]
    %v1925 = vld [vmem:[#allocation14 + $0x54] sm:$0xf]
    %v1926 = vld [vmem:[#allocation14 + $0x58] sm:$0xf]
    %v1927 = vld [vmem:[#allocation14 + $0x5c] sm:$0xf]
    %v1928 = vld [vmem:[#allocation14 + $0x60] sm:$0xf]
    %v1929 = vld [vmem:[#allocation14 + $0x64] sm:$0xf]
    %v1930 = vld [vmem:[#allocation14 + $0x68] sm:$0xf]
    %v1931 = vld [vmem:[#allocation14 + $0x6c] sm:$0xf]
    %v1932 = vld [vmem:[#allocation14 + $0x70] sm:$0xf]
    %v1933 = vld [vmem:[#allocation14 + $0x74] sm:$0xf]
    %v1934 = vld [vmem:[#allocation14 + $0x78] sm:$0xf]
    %v1935 = vld [vmem:[#allocation14 + $0x7c] sm:$0xf]
    %v1936 = vld [vmem:[%s10] sm:$0x1]
    %v1938 = vperm.slane %v1936, 0
    %v1972 = vunpack.c.l.b16 %v1904
    %v1973 = vunpack.c.l.b16 %v1905
    %v1974 = vunpack.c.l.b16 %v1906
    %v1975 = vunpack.c.l.b16 %v1907
    %v1976 = vunpack.c.l.b16 %v1908
    %v1977 = vunpack.c.l.b16 %v1909
    %v1978 = vunpack.c.l.b16 %v1910
    %v1979 = vunpack.c.l.b16 %v1911
    %v1980 = vunpack.c.l.b16 %v1912
    %v1981 = vunpack.c.l.b16 %v1913
    %v1982 = vunpack.c.l.b16 %v1914
    %v1983 = vunpack.c.l.b16 %v1915
    %v1984 = vunpack.c.l.b16 %v1916
    %v1985 = vunpack.c.l.b16 %v1917
    %v1986 = vunpack.c.l.b16 %v1918
    %v1987 = vunpack.c.l.b16 %v1919
    %v1988 = vunpack.c.l.b16 %v1920
    %v1989 = vunpack.c.l.b16 %v1921
    %v1990 = vunpack.c.l.b16 %v1922
    %v1991 = vunpack.c.l.b16 %v1923
    %v1992 = vunpack.c.l.b16 %v1924
    %v1993 = vunpack.c.l.b16 %v1925
    %v1994 = vunpack.c.l.b16 %v1926
    %v1995 = vunpack.c.l.b16 %v1927
    %v1996 = vunpack.c.l.b16 %v1928
    %v1997 = vunpack.c.l.b16 %v1929
    %v1998 = vunpack.c.l.b16 %v1930
    %v1999 = vunpack.c.l.b16 %v1931
    %v2000 = vunpack.c.l.b16 %v1932
    %v2001 = vunpack.c.l.b16 %v1933
    %v2002 = vunpack.c.l.b16 %v1934
    %v2003 = vunpack.c.l.b16 %v1935
    %v2004 = vpack.c.b16 %v1973, %v1972
    %v2005 = vpack.c.b16 %v1975, %v1974
    %v2006 = vpack.c.b16 %v1977, %v1976
    %v2007 = vpack.c.b16 %v1979, %v1978
    %v2008 = vpack.c.b16 %v1981, %v1980
    %v2009 = vpack.c.b16 %v1983, %v1982
    %v2010 = vpack.c.b16 %v1985, %v1984
    %v2011 = vpack.c.b16 %v1987, %v1986
    %v2012 = vpack.c.b16 %v1989, %v1988
    %v2013 = vpack.c.b16 %v1991, %v1990
    %v2014 = vpack.c.b16 %v1993, %v1992
    %v2015 = vpack.c.b16 %v1995, %v1994
    %v2016 = vpack.c.b16 %v1997, %v1996
    %v2017 = vpack.c.b16 %v1999, %v1998
    %v2018 = vpack.c.b16 %v2001, %v2000
    %v2019 = vpack.c.b16 %v2003, %v2002
    %2036 = vmatpush.bf16.msra.mxu0 %v2011
    %2037 = vmatpush.bf16.msra.mxu0 %v2010
    %2038 = vmatpush.bf16.msra.mxu0 %v2009
    %2039 = vmatpush.bf16.msra.mxu0 %v2008
    %2040 = vmatpush.bf16.msra.mxu0 %v2007
    %2041 = vmatpush.bf16.msra.mxu0 %v2006
    %2042 = vmatpush.bf16.msra.mxu0 %v2005
    %2043 = vmatpush.bf16.msra.mxu0 %v2004
    %2044 = vmatmul.bf16.gmra.mxu0 %v1902
    %v2045 = vpop.f32.mrf.mxu0
    %v2046 = vadd.f32 %v1938, %v2045
    %v2047 = vpop.f32.mrf.mxu0
    %2048 = vdwg.mxu0
    %2049 = vmatpush.bf16.msra.mxu0 %v2019
    %2050 = vmatpush.bf16.msra.mxu0 %v2018
    %2051 = vmatpush.bf16.msra.mxu0 %v2017
    %2052 = vmatpush.bf16.msra.mxu0 %v2016
    %2053 = vmatpush.bf16.msra.mxu0 %v2015
    %2054 = vmatpush.bf16.msra.mxu0 %v2014
    %2055 = vmatpush.bf16.msra.mxu0 %v2013
    %2056 = vmatpush.bf16.msra.mxu0 %v2012
    %2057 = vmatmul.bf16.gmra.mxu0 %v1903
    %v2058 = vpop.f32.mrf.mxu0
    %v2059 = vadd.f32 %v2046, %v2058
    %v2060 = vpop.f32.mrf.mxu0
    %2061 = vdwg.mxu0
    %v2062 = vlaneseq
    %v2063 = vand.u32 %v2062, 127
    %vm2064 = vcmp.lt.s32.totalorder %v2063, 3
    %v2065 = vsel %vm2064, 0.0, -1e+30
    %v2066 = vadd.f32 %v2059, %v2065
    %2067 = vmax.xlane.f32.xlu0 %v2066
    %v2068 = vpop.xlane.xlu0 %2067
    %v2069 = vsub.f32 %v2066, %v2068
    %v2070 = vmul.f32 %v2069, 1.442695
    %v2071 = vpow.pop %v2070
    %2072 = vadd.xlane.f32.xlu0 %v2071
    %v2073 = vpop.xlane.xlu0 %2072
    %v2074 = vrcp.pop %v2073
    %v2075 = vmul.f32 %v2071, %v2074
    %v2076 = vadd.f32 %v2075, %v2065
    %2077 = vmax.xlane.f32.xlu0 %v2076
    %v2078 = vpop.xlane.xlu0 %2077
    %v2079 = vsub.f32 %v2076, %v2078
    %v2080 = vmul.f32 %v2079, 1.442695
    %v2081 = vpow.pop %v2080
    %2082 = vadd.xlane.f32.xlu0 %v2081
    %v2083 = vpop.xlane.xlu0 %2082
    %v2084 = vrcp.pop %v2083
    %v2085 = vmul.f32 %v2081, %v2084
    %vm2086 = vcmp.eq.s32.totalorder %v2063, 3
    %2088 = vset.pattern.permute.xlu0 0
    %2089 = vperm.xlu0 %2088, %v1901
    %v2090 = vpop.permute.xlu0 %2089
    %v2092 = vsel %vm2086, %v2090, %v2085
    %2093 = vst [vmem:[#allocation15] sm:$0xff] %v2092
    // Predicated region
    $region74: #{tpu_custom_call.1} parent=1 // pred_check
      _
    $region75: #{tpu_custom_call.1} parent=1 // pred_check_branch
      %2095 = sbr.rel (0) target = $region77
    $region76: #{tpu_custom_call.1} parent=1 // pred_region
      %2097 = vsyncadd [#allocation5], 0
      %s2099 = sshll.u32 [#allocation15], 4
      %s2100 = int_to_ptr.vmem [resolvable:$true] %s2099
      %s2101 = sshll.u32 %s11, 4
      %s2102 = int_to_ptr.hbm [resolvable:$true] %s2101
      %2104 = dma.vmem_to_hbm [thread:$0]  %s2100, 128, %s2102, [#allocation5]
    $region77: #{tpu_custom_call.1} parent=1 // pred_fallthru
      _
    // Predicated region
    $region78: #{tpu_custom_call.1} parent=1 // pred_check
      _
    $region79: #{tpu_custom_call.1} parent=1 // pred_check_branch
      %2106 = sbr.rel (0) target = $region81
    $region80: #{tpu_custom_call.1} parent=1 // pred_region
      %2108 = dma.done [#allocation5], 128
    $region81: #{tpu_custom_call.1} parent=1 // pred_fallthru
      _
    %2109 = vsyncpa [#allocation4], 1
    %2110 = vsyncpa [#allocation7], 1
    %2111 = vsyncpa [#allocation10], 1
    %2112 = vsyncpa [#allocation13], 1
    %2113 = vsyncpa [#allocation5], 1

</llo_original>
